<compile_context>
chip_gen: v6e
topology: v6e:2x2x1
jax: 0.10.0
libtpu: 0.0.40
codegen_flags: <defaults>
</compile_context>

<pallas_src>
import functools
import math

import jax
import jax.numpy as jnp
from jax import lax
from jax.experimental import pallas as pl
from jax.experimental.pallas import tpu as pltpu

M2 = 0.25    # mass^2 in the phi^4 action
LAM = 0.1    # quartic coupling


# -----------------------------------------------------------------------------
# Helpers
# -----------------------------------------------------------------------------
def _ring_shift(x, delta):
    """y[..., k] = x[..., (k + delta) % n] for a static delta.

    Implemented as static lane slices + concatenate: unambiguous semantics
    (no pltpu.roll direction probe needed) and supported by Mosaic on the
    minor (lane) axis.
    """
    n = x.shape[-1]
    d = delta % n
    if d == 0:
        return x
    return jnp.concatenate([x[..., d:], x[..., :d]], axis=-1)


def _vmem_budget_and_limit():
    """Chip-derived (tile budget, scoped vmem limit) in bytes."""
    cap = 64 << 20                       # conservative default = v7x per-core VMEM
    try:
        info = pltpu.get_tpu_info()
        cap = int(getattr(info, "vmem_capacity_bytes", cap)) or cap
    except Exception:
        pass
    limit = min((cap * 3) // 4, 96 << 20)   # 48 MiB on v7x, 96 MiB on v5e/v6e
    budget = (limit * 2) // 3               # 32 MiB on v7x, 64 MiB on v5e/v6e
    return budget, limit


def _choose_tiling(batch, n_sites, vmem_budget_bytes):
    """Pick (tb, padded_batch): tb is a multiple of 8 that divides padded_batch
    and keeps the whole working set (pipelined I/O + body temporaries) in VMEM."""
    # Peak VMEM per batch row (f32):
    #   eps in + samples out, double-buffered : 2 * 2 * N * 4
    #   ~8 live (tb, N) temporaries in the body (z, shifted copies, z2,
    #   site_act, eps^2, ...)                 : 8 * N * 4
    bytes_per_row = (2 * 2 + 8) * n_sites * 4
    cap = max(8, (vmem_budget_bytes // bytes_per_row) // 8 * 8)
    # Keep several grid steps when the batch allows it: lets v7x shard the
    # 'parallel' axis across both TensorCores and gives the pipeline DMA to
    # overlap (nt >= 4 for larger batches, >= 2 otherwise).
    if batch >= 32:
        cap = min(cap, max(8, (batch // 4) // 8 * 8))
    elif batch >= 16:
        cap = min(cap, max(8, (batch // 2) // 8 * 8))
    b_pad8 = ((batch + 7) // 8) * 8          # sublane-pad the batch
    tb = min(cap, b_pad8)
    for cand in range(tb, 7, -8):            # largest multiple of 8 dividing b_pad8
        if b_pad8 % cand == 0:
            return cand, b_pad8
    return 8, b_pad8                         # unreachable (8 always divides b_pad8)


# -----------------------------------------------------------------------------
# Kernel
# -----------------------------------------------------------------------------
def reparam_kl_kernel(eps_ref, mu_ref, sigma_ref, samples_ref, scal_ref, *, l2):
    n = eps_ref.shape[-1]                 # flattened lattice size L1*L2 (lane axis)
    eps = eps_ref[...]                    # (tb, n) f32, lane-dense
    mu = mu_ref[...]                      # (1, n), resident
    sigma = sigma_ref[...]                # (1, n), exp(log_sigma) precomputed

    # --- reparameterized sample z = mu + sigma * eps (VPU) --------------------
    z = mu + sigma * eps                  # (tb, n)
    samples_ref[...] = z                  # full-tile unmasked lane-dense store

    # --- periodic nearest neighbours on the flattened ring (XLU shifts) -------
    # slow lattice axis: phi(i+1, j) is an exact +l2 shift on the flat ring.
    z_row = _ring_shift(z, l2)
    # fast lattice axis: phi(i, j+1) is a +1 shift, except the last column whose
    # neighbour is the first column of the same row (+1-l2 shift).
    z_p1 = _ring_shift(z, 1)
    z_wrap = _ring_shift(z, 1 - l2)
    col = lax.broadcasted_iota(jnp.int32, (1, n), 1) % l2
    z_col = jnp.where(col == (l2 - 1), z_wrap, z_p1)

    # --- phi^4 action density (VPU) --------------------------------------------
    z2 = z * z
    site_act = (0.5 * ((z_row - z) ** 2 + (z_col - z) ** 2)
                + (0.5 * M2) * z2 + LAM * z2 * z2)

    # --- per-sample reductions on the (otherwise idle) MXU ---------------------
    # (1, n) x (tb, n)^T dots land the scalars lane-dense as (1, tb): no XLU
    # cross-lane reduce, no (tb, k)->(k, tb) transpose, no masked narrow store.
    # precision=HIGHEST keeps the 256-term f32 sums f32-accurate.
    dn = (((1,), (1,)), ((), ()))
    w_logq = jnp.full((1, n), -0.5, dtype=jnp.float32)
    w_ones = jnp.ones((1, n), dtype=jnp.float32)
    logq_part = lax.dot_general(w_logq, eps * eps, dn,
                                precision=lax.Precision.HIGHEST,
                                preferred_element_type=jnp.float32)   # (1, tb)
    act = lax.dot_general(w_ones, site_act, dn,
                          precision=lax.Precision.HIGHEST,
                          preferred_element_type=jnp.float32)         # (1, tb)

    # row 0: -0.5*sum(eps^2)  (log q up to an additive constant), row 1: action
    scal_ref[...] = jnp.concatenate([logq_part, act], axis=0)[None]   # (1, 2, tb)


# -----------------------------------------------------------------------------
# Wrapper
# -----------------------------------------------------------------------------
def reparam_kl(eps, mu, log_sigma, *, tb=None):
    """Returns (loss_mean, loss, actions, samples), matching ReparamKL.forward()."""
    B, L1, L2 = eps.shape
    N = L1 * L2

    budget, vmem_limit = _vmem_budget_and_limit()
    if tb is None:
        tb, B_pad = _choose_tiling(B, N, budget)
    else:
        assert tb % 8 == 0, "tb must be a multiple of 8 (sublane constraint)"
        B_pad = ((B + tb - 1) // tb) * tb
    nt = B_pad // tb

    # Lane-dense re-layout; per-step constants precomputed once (no in-kernel
    # exp / row-sum re-derivation).
    eps_f = eps.reshape(B, N).astype(jnp.float32)
    if B_pad > B:
        eps_f = jnp.pad(eps_f, ((0, B_pad - B), (0, 0)))
    mu_f = mu.reshape(1, N).astype(jnp.float32)
    sigma_f = jnp.exp(log_sigma).reshape(1, N).astype(jnp.float32)
    c = jnp.float32(-0.5 * N * math.log(2.0 * math.pi)) - jnp.sum(
        log_sigma.astype(jnp.float32))

    kernel = functools.partial(reparam_kl_kernel, l2=L2)

    samples_f, scal = pl.pallas_call(
        kernel,
        grid=(nt,),
        in_specs=[
            pl.BlockSpec((tb, N), lambda i: (i, 0)),        # eps tile
            pl.BlockSpec((1, N), lambda i: (0, 0)),         # mu (resident)
            pl.BlockSpec((1, N), lambda i: (0, 0)),         # sigma (resident)
        ],
        out_specs=(
            pl.BlockSpec((tb, N), lambda i: (i, 0)),        # samples tile
            pl.BlockSpec((1, 2, tb), lambda i: (i, 0, 0)),  # per-tile scalar pack
        ),
        out_shape=(
            jax.ShapeDtypeStruct((B_pad, N), jnp.float32),
            jax.ShapeDtypeStruct((nt, 2, tb), jnp.float32),
        ),
        compiler_params=pltpu.CompilerParams(
            # No cross-tile state: the batch axis is safe to split across both
            # v7x TensorCores; neutral on single-TC v5e/v6e.
            dimension_semantics=("parallel",),
            vmem_limit_bytes=vmem_limit,
        ),
        cost_estimate=pl.CostEstimate(
            flops=30 * B_pad * N,
            transcendentals=0,
            bytes_accessed=4 * (2 * B_pad * N + 2 * N + 2 * B_pad),
        ),
    )(eps_f, mu_f, sigma_f)

    samples = samples_f[:B].reshape(B, L1, L2)
    # Free wrapper-side layout plumbing on tiny (2, B) data.
    scal = jnp.transpose(scal, (1, 0, 2)).reshape(2, B_pad)[:, :B]
    log_probs = scal[0] + c          # log q(z) = -0.5*sum(eps^2) + c
    actions = scal[1]
    loss = actions + log_probs
    loss_mean = jnp.mean(loss)
    return loss_mean, loss, actions, samples


# -----------------------------------------------------------------------------
# Pure-JAX reference + self-test
# -----------------------------------------------------------------------------
def _reference(eps, mu, log_sigma):
    sigma = jnp.exp(log_sigma)
    z = mu[None] + sigma[None] * eps
    logq = jnp.sum(-0.5 * eps * eps - 0.5 * math.log(2.0 * math.pi)
                   - log_sigma[None], axis=(1, 2))
    kin = 0.5 * ((jnp.roll(z, -1, axis=1) - z) ** 2
                 + (jnp.roll(z, -1, axis=2) - z) ** 2)
    act = jnp.sum(kin + 0.5 * M2 * z * z + LAM * z ** 4, axis=(1, 2))
    loss = act + logq
    return jnp.mean(loss), loss, act, z


if __name__ == "__main__":
    B = 16              # batch_size
    L1, L2 = 16, 16     # lat_shape

    key = jax.random.PRNGKey(0)
    k_eps, k_mu, k_ls = jax.random.split(key, 3)
    # "Model" parameters, deterministic in-script init (no checkpoint load).
    eps = jax.random.normal(k_eps, (B, L1, L2), dtype=jnp.float32)
    mu = 0.05 * jax.random.normal(k_mu, (L1, L2), dtype=jnp.float32)
    log_sigma = -0.3 + 0.02 * jax.random.normal(k_ls, (L1, L2), dtype=jnp.float32)

    loss_mean, loss, actions, samples = jax.block_until_ready(
        reparam_kl(eps, mu, log_sigma))

    ref_mean, ref_loss, ref_act, ref_z = _reference(eps, mu, log_sigma)

    # samples are elementwise -> tight tolerance.
    assert jnp.allclose(samples, ref_z, atol=1e-5, rtol=1e-5), "samples mismatch"
    # actions/log-probs are fp32 sums of 256 O(1) terms (|sum| ~ 3e2); kernel
    # and reference use different (equally valid) reduction orders, so
    # ~1e-3-level absolute differences are expected fp32 noise.
    assert jnp.allclose(actions, ref_act, atol=5e-3, rtol=1e-4), "actions mismatch"
    # loss = S(phi) + log q cancels two ~3e2-magnitude terms down to ~4e1, so
    # compare with an absolute tolerance sized to the error of the underlying
    # 256-term fp32 sums, not to |loss| itself.
    assert jnp.allclose(loss, ref_loss, atol=1e-2, rtol=1e-4), "loss mismatch"
    assert jnp.allclose(loss_mean, ref_mean, atol=1e-2, rtol=1e-4), "loss_mean mismatch"

    print("KERNEL_OK")
</pallas_src>

<mosaic_0001>
module attributes {stable_mosaic.version = 11 : i64} {
  func.func @reparam_kl_kernel(%arg0: i32, %arg1: memref<8x256xf32, #tpu.memory_space<vmem>>, %arg2: memref<1x256xf32, #tpu.memory_space<vmem>>, %arg3: memref<1x256xf32, #tpu.memory_space<vmem>>, %arg4: memref<8x256xf32, #tpu.memory_space<vmem>>, %arg5: memref<1x2x8xf32, #tpu.memory_space<vmem>>) attributes {dimension_semantics = [#tpu.dimension_semantics<parallel>], iteration_bounds = array<i64: 2>, scalar_prefetch = 0 : i64, scratch_operands = 0 : i64, tpu.core_type = #tpu.core_type<tc>, window_params = [{transform_indices = @transform_0, window_bounds = array<i64: 8, 256>}, {pipeline_mode = #tpu.pipeline_mode<synchronous>, transform_indices = @transform_1, window_bounds = array<i64: 1, 256>}, {pipeline_mode = #tpu.pipeline_mode<synchronous>, transform_indices = @transform_2, window_bounds = array<i64: 1, 256>}, {transform_indices = @transform_3, window_bounds = array<i64: 8, 256>}, {transform_indices = @transform_4, window_bounds = array<i64: 1, 2, 8>}]} {
    %c0 = arith.constant 0 : index
    %c0_0 = arith.constant 0 : index
    %0 = vector.load %arg1[%c0, %c0_0] : memref<8x256xf32, #tpu.memory_space<vmem>>, vector<8x256xf32>
    %c0_1 = arith.constant 0 : index
    %c0_2 = arith.constant 0 : index
    %1 = vector.load %arg2[%c0_1, %c0_2] : memref<1x256xf32, #tpu.memory_space<vmem>>, vector<1x256xf32>
    %c0_3 = arith.constant 0 : index
    %c0_4 = arith.constant 0 : index
    %2 = vector.load %arg3[%c0_3, %c0_4] : memref<1x256xf32, #tpu.memory_space<vmem>>, vector<1x256xf32>
    %3 = vector.broadcast %2 : vector<1x256xf32> to vector<8x256xf32>
    %4 = arith.mulf %3, %0 : vector<8x256xf32>
    %5 = vector.broadcast %1 : vector<1x256xf32> to vector<8x256xf32>
    %6 = arith.addf %5, %4 : vector<8x256xf32>
    %c0_5 = arith.constant 0 : index
    %c0_6 = arith.constant 0 : index
    %7 = vector.load %arg4[%c0_5, %c0_6] : memref<8x256xf32, #tpu.memory_space<vmem>>, vector<8x256xf32>
    tpu.vector_store %arg4[%c0_5, %c0_6], %6 {strides = array<i32>} : memref<8x256xf32, #tpu.memory_space<vmem>>, vector<8x256xf32>,
    %8 = vector.extract_strided_slice %6 {offsets = [0, 16], sizes = [8, 240], strides = [1, 1]} : vector<8x256xf32> to vector<8x240xf32>
    %9 = vector.extract_strided_slice %6 {offsets = [0, 0], sizes = [8, 16], strides = [1, 1]} : vector<8x256xf32> to vector<8x16xf32>
    %10 = tpu.concatenate %8, %9 in 1 : vector<8x240xf32>, vector<8x16xf32> -> vector<8x256xf32>
    %11 = vector.extract_strided_slice %6 {offsets = [0, 1], sizes = [8, 255], strides = [1, 1]} : vector<8x256xf32> to vector<8x255xf32>
    %12 = vector.extract_strided_slice %6 {offsets = [0, 0], sizes = [8, 1], strides = [1, 1]} : vector<8x256xf32> to vector<8x1xf32>
    %13 = tpu.concatenate %11, %12 in 1 : vector<8x255xf32>, vector<8x1xf32> -> vector<8x256xf32>
    %14 = vector.extract_strided_slice %6 {offsets = [0, 241], sizes = [8, 15], strides = [1, 1]} : vector<8x256xf32> to vector<8x15xf32>
    %15 = vector.extract_strided_slice %6 {offsets = [0, 0], sizes = [8, 241], strides = [1, 1]} : vector<8x256xf32> to vector<8x241xf32>
    %16 = tpu.concatenate %14, %15 in 1 : vector<8x15xf32>, vector<8x241xf32> -> vector<8x256xf32>
    %17 = tpu.iota {dimensions = array<i32: 1>} : vector<1x256xi32>
    %c16_i32 = arith.constant 16 : i32
    %c0_i32 = arith.constant 0 : i32
    %18 = arith.cmpi eq, %c16_i32, %c0_i32 : i32
    %c1_i32 = arith.constant 1 : i32
    %19 = arith.select %18, %c1_i32, %c16_i32 : i32
    %20 = vector.broadcast %19 : i32 to vector<1x256xi32>
    %21 = arith.remsi %17, %20 : vector<1x256xi32>
    %c0_i32_7 = arith.constant 0 : i32
    %22 = vector.broadcast %c0_i32_7 : i32 to vector<1x256xi32>
    %23 = arith.cmpi ne, %21, %22 : vector<1x256xi32>
    %c0_i32_8 = arith.constant 0 : i32
    %24 = vector.broadcast %c0_i32_8 : i32 to vector<1x256xi32>
    %25 = arith.cmpi slt, %21, %24 : vector<1x256xi32>
    %c0_i32_9 = arith.constant 0 : i32
    %26 = arith.cmpi slt, %19, %c0_i32_9 : i32
    %27 = vector.broadcast %26 : i1 to vector<1x256xi1>
    %28 = vector.broadcast %27 : vector<1x256xi1> to vector<1x256xi1>
    %29 = arith.xori %25, %28 : vector<1x256xi1>
    %30 = arith.andi %29, %23 : vector<1x256xi1>
    %31 = vector.broadcast %19 : i32 to vector<1x256xi32>
    %32 = arith.addi %21, %31 : vector<1x256xi32>
    %33 = arith.select %30, %32, %21 : vector<1x256xi1>, vector<1x256xi32>
    %c15_i32 = arith.constant 15 : i32
    %34 = vector.broadcast %c15_i32 : i32 to vector<1x256xi32>
    %35 = arith.cmpi eq, %33, %34 : vector<1x256xi32>
    %36 = vector.shape_cast %35 : vector<1x256xi1> to vector<1x256xi1>
    %37 = vector.broadcast %36 : vector<1x256xi1> to vector<8x256xi1>
    %38 = arith.select %37, %16, %13 : vector<8x256xi1>, vector<8x256xf32>
    %39 = arith.mulf %6, %6 : vector<8x256xf32>
    %40 = arith.subf %10, %6 : vector<8x256xf32>
    %41 = arith.mulf %40, %40 : vector<8x256xf32>
    %42 = arith.subf %38, %6 : vector<8x256xf32>
    %43 = arith.mulf %42, %42 : vector<8x256xf32>
    %44 = arith.addf %41, %43 : vector<8x256xf32>
    %cst = arith.constant 5.000000e-01 : f32
    %45 = vector.broadcast %cst : f32 to vector<8x256xf32>
    %46 = arith.mulf %45, %44 : vector<8x256xf32>
    %cst_10 = arith.constant 1.250000e-01 : f32
    %47 = vector.broadcast %cst_10 : f32 to vector<8x256xf32>
    %48 = arith.mulf %47, %39 : vector<8x256xf32>
    %49 = arith.addf %46, %48 : vector<8x256xf32>
    %cst_11 = arith.constant 1.000000e-01 : f32
    %50 = vector.broadcast %cst_11 : f32 to vector<8x256xf32>
    %51 = arith.mulf %50, %39 : vector<8x256xf32>
    %52 = arith.mulf %51, %39 : vector<8x256xf32>
    %53 = arith.addf %49, %52 : vector<8x256xf32>
    %cst_12 = arith.constant -5.000000e-01 : f32
    %54 = vector.broadcast %cst_12 : f32 to vector<1x256xf32>
    %cst_13 = arith.constant 1.000000e+00 : f32
    %55 = vector.broadcast %cst_13 : f32 to vector<1x256xf32>
    %56 = arith.mulf %0, %0 : vector<8x256xf32>
    %cst_14 = arith.constant dense<0.000000e+00> : vector<1x8xf32>
    %57 = tpu.matmul %54, %56, %cst_14 {dimension_numbers = #tpu.dot_dimension_numbers<[1], [1], [0], [0], [0, 0, 1, 0], [], []>, precision = #tpu.contract_precision<fp32>} : vector<1x256xf32>, vector<8x256xf32>, vector<1x8xf32> -> vector<1x8xf32>
    %cst_15 = arith.constant dense<0.000000e+00> : vector<1x8xf32>
    %58 = tpu.matmul %55, %53, %cst_15 {dimension_numbers = #tpu.dot_dimension_numbers<[1], [1], [0], [0], [0, 0, 1, 0], [], []>, precision = #tpu.contract_precision<fp32>} : vector<1x256xf32>, vector<8x256xf32>, vector<1x8xf32> -> vector<1x8xf32>
    %59 = tpu.concatenate %57, %58 in 0 : vector<1x8xf32>, vector<1x8xf32> -> vector<2x8xf32>
    %60 = vector.shape_cast %59 : vector<2x8xf32> to vector<1x2x8xf32>
    %c0_16 = arith.constant 0 : index
    %c0_17 = arith.constant 0 : index
    %c0_18 = arith.constant 0 : index
    %61 = vector.load %arg5[%c0_16, %c0_17, %c0_18] : memref<1x2x8xf32, #tpu.memory_space<vmem>>, vector<1x2x8xf32>
    tpu.vector_store %arg5[%c0_16, %c0_17, %c0_18], %60 {strides = array<i32>} : memref<1x2x8xf32, #tpu.memory_space<vmem>>, vector<1x2x8xf32>,
    return
  }
  func.func @transform_0(%arg0: i32) -> (i32, i32) {
    %c0_i32 = arith.constant 0 : i32
    %c0_i32_0 = arith.constant 0 : i32
    return %arg0, %c0_i32 : i32, i32
  }
  func.func @transform_1(%arg0: i32) -> (i32, i32) {
    %c0_i32 = arith.constant 0 : i32
    %c0_i32_0 = arith.constant 0 : i32
    %c0_i32_1 = arith.constant 0 : i32
    return %c0_i32, %c0_i32_0 : i32, i32
  }
  func.func @transform_2(%arg0: i32) -> (i32, i32) {
    %c0_i32 = arith.constant 0 : i32
    %c0_i32_0 = arith.constant 0 : i32
    %c0_i32_1 = arith.constant 0 : i32
    return %c0_i32, %c0_i32_0 : i32, i32
  }
  func.func @transform_3(%arg0: i32) -> (i32, i32) {
    %c0_i32 = arith.constant 0 : i32
    %c0_i32_0 = arith.constant 0 : i32
    return %arg0, %c0_i32 : i32, i32
  }
  func.func @transform_4(%arg0: i32) -> (i32, i32, i32) {
    %c0_i32 = arith.constant 0 : i32
    %c0_i32_0 = arith.constant 0 : i32
    %c0_i32_1 = arith.constant 0 : i32
    return %arg0, %c0_i32, %c0_i32_0 : i32, i32, i32
  }
}

</mosaic_0001>

<llo_original>
// kernel: tpu_custom_call.1
$region0: #{tpu_custom_call.1}
  #allocation0 [shape = 'u32[]', space=smem, size = 0x4, offset = 0x4, fixed_abs, tag = 'smem constant byte address 0x4 - core index']
  #allocation1 [shape = 'u32[144,128]{1,0:T(1,128)}', space=vmem, size = 0x12000, scoped, tag = 'internal scratch']
  %s0 = inlined_call_operand.hbm [shape: f32[16,256], index: 0, kind: input, shape index: {}]
  %s1 = inlined_call_operand.hbm [shape: f32[1,256], index: 1, kind: input, shape index: {}]
  %s2 = inlined_call_operand.vmem [shape: f32[1,256], index: 2, kind: input, shape index: {}]
  %s3 = inlined_call_operand.hbm [shape: f32[16,256], index: 3, kind: output, shape index: {0}]
  %s4 = inlined_call_operand.hbm [shape: f32[2,2,8], index: 4, kind: output, shape index: {1}]
  %5 = xla_tuple %s3, %s4
  %s6 = sld [smem:[#allocation0]]
  $region61: #{tpu_custom_call.1} parent=0
    _
  %s8 = ssub.s32 1, %s6
  %s9 = scalar_select 0, %s8, %s6
  $region1: #{tpu_custom_call.1} parent=0
    #allocation2 [shape = 'u8[16384]{0}', space=vmem, size = 0x4000, scoped, tag = 'input window, operand 0']
    #allocation3 [shape = 's32[2]{0}', space=sflag, size = 0x8, scoped, tag = 'scoped memory for tpu_custom_call.1']
    #allocation4 [shape = 's32[2]{0}', space=sflag, size = 0x8, scoped, tag = 'scoped memory for tpu_custom_call.1']
    #allocation5 [shape = 'u8[1024]{0}', space=vmem, size = 0x400, scoped, tag = 'input window, operand 1, single buffered']
    #allocation6 [shape = 's32[1]{0}', space=sflag, size = 0x4, scoped, tag = 'scoped memory for tpu_custom_call.1']
    #allocation7 [shape = 'u8[16384]{0}', space=vmem, size = 0x4000, scoped, tag = 'output window, operand 0']
    #allocation8 [shape = 'u8[2048]{0}', space=vmem, size = 0x800, scoped, tag = 'output window, operand 1']
    #allocation9 [shape = 's32[2]{0}', space=sflag, size = 0x8, scoped, tag = 'scoped memory for tpu_custom_call.1']
    %10 = vsyncpa [#allocation3], 0
    %s11 = scalar_lea.sflag [#allocation3], 1
    %12 = vsyncpa %s11, 0
    %13 = vsyncpa [#allocation6], 0
    %14 = vsyncpa [#allocation4], 0
    %s15 = scalar_lea.sflag [#allocation4], 1
    %16 = vsyncpa %s15, 0
    %17 = vsyncpa [#allocation9], 0
    %s18 = scalar_lea.sflag [#allocation9], 1
    %19 = vsyncpa %s18, 0
    loop: start=0, step=1, limit=4
    $region2: #{tpu_custom_call.1} parent=1 // loop_pre_header
      _
    $region3: #{tpu_custom_call.1} parent=1 // loop_header
      %s21 = sphi 0, %s25
      %p22 = scmp.ge.s32.totalorder %s21, 4
      %s31 = sphi 0, %s33
      %s34 = sphi 0, %s31
      %s35 = sphi 0, %s34
      %s51 = sphi 0, %s35
      %s55 = sphi 0, %s55
      %s57 = sphi 0, %s55
      %s58 = sphi 0, %s57
      %s72 = sphi 0, %s58
      %s76 = sphi 0, %s76
      %s78 = sphi 0, %s76
      %s79 = sphi 0, %s78
      %s93 = sphi 0, %s79
      %s99 = sphi 0, %s101
      %s102 = sphi 0, %s99
      %s103 = sphi 0, %s102
      %s119 = sphi 0, %s103
      %s125 = sphi 0, %s127
      %s128 = sphi 0, %s125
      %s129 = sphi 0, %s128
      %s145 = sphi 0, %s129
    $region4: #{tpu_custom_call.1} parent=1 // loop_header_branch
      %24 = sbr.rel (%p22) target = $region8
    $region5: #{tpu_custom_call.1} parent=1 // loop_body
      %s26 = ssub.s32 %s21, 1
      %s27 = ssub.s32 %s21, 2
      %s28 = sadd.s32 %s21, 1
      %s29 = ssub.s32 %s21, %s28
      %p30 = scmp.eq.s32.totalorder %s29, 0
      %s32 = sadd.s32 %s31, 1
      %s33 = scalar_select %p30, %s31, %s32
      %p36 = pneg %p30
      %p37 = scmp.eq.s32.totalorder %s21, 1
      %p38 = por %p36, %p37
      %p39 = scmp.ne.s32.totalorder %s31, %s34
      %p40 = scmp.eq.s32.totalorder %s21, 0
      %p41 = por %p39, %p40
      %p42 = scmp.ne.s32.totalorder %s31, %s34
      %p43 = scmp.eq.s32.totalorder %s26, 1
      %p44 = por %p42, %p43
      %p45 = scmp.ne.s32.totalorder %s34, %s35
      %p46 = scmp.eq.s32.totalorder %s26, 0
      %p47 = por %p45, %p46
      %p48 = scmp.ne.s32.totalorder %s34, %s35
      %p49 = scmp.eq.s32.totalorder %s27, 1
      %p50 = por %p48, %p49
      %p52 = scmp.ne.s32.totalorder %s35, %s51
      %p53 = scmp.eq.s32.totalorder %s27, 0
      %p54 = por %p52, %p53
      %s56 = sadd.s32 %s55, 1
      %p59 = scmp.eq.s32.totalorder %s21, 1
      %p60 = scmp.ne.s32.totalorder %s55, %s57
      %p61 = scmp.eq.s32.totalorder %s21, 0
      %p62 = por %p60, %p61
      %p63 = scmp.ne.s32.totalorder %s55, %s57
      %p64 = scmp.eq.s32.totalorder %s26, 1
      %p65 = por %p63, %p64
      %p66 = scmp.ne.s32.totalorder %s57, %s58
      %p67 = scmp.eq.s32.totalorder %s26, 0
      %p68 = por %p66, %p67
      %p69 = scmp.ne.s32.totalorder %s57, %s58
      %p70 = scmp.eq.s32.totalorder %s27, 1
      %p71 = por %p69, %p70
      %p73 = scmp.ne.s32.totalorder %s58, %s72
      %p74 = scmp.eq.s32.totalorder %s27, 0
      %p75 = por %p73, %p74
      %s77 = sadd.s32 %s76, 1
      %p80 = scmp.eq.s32.totalorder %s21, 1
      %p81 = scmp.ne.s32.totalorder %s76, %s78
      %p82 = scmp.eq.s32.totalorder %s21, 0
      %p83 = por %p81, %p82
      %p84 = scmp.ne.s32.totalorder %s76, %s78
      %p85 = scmp.eq.s32.totalorder %s26, 1
      %p86 = por %p84, %p85
      %p87 = scmp.ne.s32.totalorder %s78, %s79
      %p88 = scmp.eq.s32.totalorder %s26, 0
      %p89 = por %p87, %p88
      %p90 = scmp.ne.s32.totalorder %s78, %s79
      %p91 = scmp.eq.s32.totalorder %s27, 1
      %p92 = por %p90, %p91
      %p94 = scmp.ne.s32.totalorder %s79, %s93
      %p95 = scmp.eq.s32.totalorder %s27, 0
      %p96 = por %p94, %p95
      %s97 = ssub.s32 %s21, %s28
      %p98 = scmp.eq.s32.totalorder %s97, 0
      %s100 = sadd.s32 %s99, 1
      %s101 = scalar_select %p98, %s99, %s100
      %p104 = pneg %p98
      %p105 = scmp.eq.s32.totalorder %s21, 1
      %p106 = por %p104, %p105
      %p107 = scmp.ne.s32.totalorder %s99, %s102
      %p108 = scmp.eq.s32.totalorder %s21, 0
      %p109 = por %p107, %p108
      %p110 = scmp.ne.s32.totalorder %s99, %s102
      %p111 = scmp.eq.s32.totalorder %s26, 1
      %p112 = por %p110, %p111
      %p113 = scmp.ne.s32.totalorder %s102, %s103
      %p114 = scmp.eq.s32.totalorder %s26, 0
      %p115 = por %p113, %p114
      %p116 = scmp.ne.s32.totalorder %s102, %s103
      %p117 = scmp.eq.s32.totalorder %s27, 1
      %p118 = por %p116, %p117
      %p120 = scmp.ne.s32.totalorder %s103, %s119
      %p121 = scmp.eq.s32.totalorder %s27, 0
      %p122 = por %p120, %p121
      %s123 = ssub.s32 %s21, %s28
      %p124 = scmp.eq.s32.totalorder %s123, 0
      %s126 = sadd.s32 %s125, 1
      %s127 = scalar_select %p124, %s125, %s126
      %p130 = pneg %p124
      %p131 = scmp.eq.s32.totalorder %s21, 1
      %p132 = por %p130, %p131
      %p133 = scmp.ne.s32.totalorder %s125, %s128
      %p134 = scmp.eq.s32.totalorder %s21, 0
      %p135 = por %p133, %p134
      %p136 = scmp.ne.s32.totalorder %s125, %s128
      %p137 = scmp.eq.s32.totalorder %s26, 1
      %p138 = por %p136, %p137
      %p139 = scmp.ne.s32.totalorder %s128, %s129
      %p140 = scmp.eq.s32.totalorder %s26, 0
      %p141 = por %p139, %p140
      %p142 = scmp.ne.s32.totalorder %s128, %s129
      %p143 = scmp.eq.s32.totalorder %s27, 1
      %p144 = por %p142, %p143
      %p146 = scmp.ne.s32.totalorder %s129, %s145
      %p147 = scmp.eq.s32.totalorder %s27, 0
      %p148 = por %p146, %p147
      %p149 = scmp.le.s32.totalorder 1, %s21
      %p150 = scmp.lt.s32.totalorder %s21, 3
      %p151 = pnand %p149, %p150
      %p152 = pneg %p151
      // Predicated region
      $region9: #{tpu_custom_call.1} parent=5 // pred_check
        _
      $region10: #{tpu_custom_call.1} parent=5 // pred_check_branch
        %154 = sbr.rel (%p151) target = $region12
      $region11: #{tpu_custom_call.1} parent=5 // pred_region
        %s155 = ssub.s32 %s21, 1
        // Predicated region
        $region13: #{tpu_custom_call.1} parent=11 // pred_check
          %p156 = pneg %p68
        $region14: #{tpu_custom_call.1} parent=11 // pred_check_branch
          %158 = sbr.rel (%p156) target = $region16
        $region15: #{tpu_custom_call.1} parent=11 // pred_region
          %s160 = ssub.s32 32, 32
          %161 = vsyncadd [#allocation6], %s160
          %s163 = sshll.u32 [#allocation5], 4
          %s164 = int_to_ptr.vmem [resolvable:$true] %s163
          %166 = dma.hbm_to_vmem [thread:$0]  %s1, 32, %s164, [#allocation6]
        $region16: #{tpu_custom_call.1} parent=11 // pred_fallthru
          _
        // Predicated region
        $region17: #{tpu_custom_call.1} parent=11 // pred_check
          %p167 = pneg %p89
        $region18: #{tpu_custom_call.1} parent=11 // pred_check_branch
          %169 = sbr.rel (%p167) target = $region20
        $region19: #{tpu_custom_call.1} parent=11 // pred_region
          _
        $region20: #{tpu_custom_call.1} parent=11 // pred_fallthru
          _
      $region12: #{tpu_custom_call.1} parent=5 // pred_fallthru
        _
      %p170 = scmp.lt.s32.totalorder %s21, 2
      // Predicated region
      $region21: #{tpu_custom_call.1} parent=5 // pred_check
        %p171 = pneg %p170
      $region22: #{tpu_custom_call.1} parent=5 // pred_check_branch
        %173 = sbr.rel (%p171) target = $region24
      $region23: #{tpu_custom_call.1} parent=5 // pred_region
        // Predicated region
        $region25: #{tpu_custom_call.1} parent=23 // pred_check
          %p174 = pneg %p41
        $region26: #{tpu_custom_call.1} parent=23 // pred_check_branch
          %176 = sbr.rel (%p174) target = $region28
        $region27: #{tpu_custom_call.1} parent=23 // pred_region
          %s177 = sand.u32 %s31, 1
          %s178 = scalar_lea.sflag [#allocation3], %s177
          %s179 = sand.u32 %s31, 1
          %s180 = smul.addr %s179, 16
          %s181 = scalar_lea.vmem [#allocation2], %s180
          %s183 = ssub.s32 256, 256
          %184 = vsyncadd %s178, %s183
          %s185 = smul.addr %s21, 2
          %s186 = smul.addr %s185, 128
          %s187 = scalar_lea.hbm %s0, %s186
          %s189 = sshll.u32 %s181, 4
          %s190 = int_to_ptr.vmem [resolvable:$true] %s189
          %192 = dma.hbm_to_vmem [thread:$0]  %s187, 256, %s190, %s178
        $region28: #{tpu_custom_call.1} parent=23 // pred_fallthru
          _
      $region24: #{tpu_custom_call.1} parent=5 // pred_fallthru
        _
      %p193 = scmp.le.s32.totalorder 1, %s21
      %p194 = scmp.lt.s32.totalorder %s21, 3
      %p195 = pnand %p193, %p194
      %p196 = pneg %p195
      // Predicated region
      $region29: #{tpu_custom_call.1} parent=5 // pred_check
        _
      $region30: #{tpu_custom_call.1} parent=5 // pred_check_branch
        %198 = sbr.rel (%p195) target = $region32
      $region31: #{tpu_custom_call.1} parent=5 // pred_region
        %s199 = ssub.s32 %s21, 1
        %s200 = sand.u32 %s34, 1
        %s201 = scalar_lea.sflag [#allocation3], %s200
        %s202 = sand.u32 %s34, 1
        %s203 = smul.addr %s202, 16
        %s204 = scalar_lea.vmem [#allocation2], %s203
        // Predicated region
        $region33: #{tpu_custom_call.1} parent=31 // pred_check
          %p205 = pneg %p47
        $region34: #{tpu_custom_call.1} parent=31 // pred_check_branch
          %207 = sbr.rel (%p205) target = $region36
        $region35: #{tpu_custom_call.1} parent=31 // pred_region
          %208 = dma.done %s201, 256
        $region36: #{tpu_custom_call.1} parent=31 // pred_fallthru
          _
        // Predicated region
        $region37: #{tpu_custom_call.1} parent=31 // pred_check
          %p209 = pneg %p68
        $region38: #{tpu_custom_call.1} parent=31 // pred_check_branch
          %211 = sbr.rel (%p209) target = $region40
        $region39: #{tpu_custom_call.1} parent=31 // pred_region
          %212 = dma.done [#allocation6], 32
        $region40: #{tpu_custom_call.1} parent=31 // pred_fallthru
          _
        %s213 = sand.u32 %s34, 1
        %s214 = scalar_lea.sflag [#allocation3], %s213
        %s215 = sand.u32 %s34, 1
        %s216 = smul.addr %s215, 16
        %s217 = scalar_lea.vmem [#allocation2], %s216
        %p218 = pneg %p47
        %p219 = pneg %p44
        %p220 = pneg %p68
        %p221 = pneg %p65
        %p222 = pneg %p89
        %p223 = pneg %p86
        %p224 = pneg %p115
        %p225 = pneg %p112
        %s226 = sand.u32 %s102, 1
        %s227 = scalar_lea.sflag [#allocation4], %s226
        %s228 = sand.u32 %s102, 1
        %s229 = smul.addr %s228, 16
        %s230 = scalar_lea.vmem [#allocation7], %s229
        %p231 = pneg %p141
        %p232 = pneg %p138
        %s233 = sand.u32 %s128, 1
        %s234 = scalar_lea.sflag [#allocation9], %s233
        %s235 = sand.u32 %s128, 1
        %s236 = smul.addr %s235, 2
        %s237 = scalar_lea.vmem [#allocation8], %s236
        %v238 = vld [vmem:[%s204] sm:$0xff]
        %v239 = vld [vmem:[%s204 + $0x8] sm:$0xff]
        %v240 = vld [vmem:[#allocation5] sm:$0x3]
        %v241 = vld [vmem:[%s2] sm:$0x3]
        %v243 = vlaneseq
        %v244 = vshrl.u32 %v243, 7
        %v245 = vsub.s32 0, %v244
        %v246 = vrot.slane %v241, %v245
        %v247 = vlaneseq
        %v248 = vshrl.u32 %v247, 7
        %v249 = vsub.s32 1, %v248
        %v250 = vrot.slane %v241, %v249
        %v253 = vmul.f32 %v246, %v238
        %v254 = vmul.f32 %v250, %v239
        %v256 = vlaneseq
        %v257 = vshrl.u32 %v256, 7
        %v258 = vsub.s32 0, %v257
        %v259 = vrot.slane %v240, %v258
        %v260 = vlaneseq
        %v261 = vshrl.u32 %v260, 7
        %v262 = vsub.s32 1, %v261
        %v263 = vrot.slane %v240, %v262
        %v266 = vadd.f32 %v259, %v253
        %v267 = vadd.f32 %v263, %v254
        %268 = vst [vmem:[%s230] sm:$0xff] %v266
        %269 = vst [vmem:[%s230 + $0x8] sm:$0xff] %v267
        %272 = vrot.lane.b32.xlu0 %v266, 112
        %v273 = vpop.permute.xlu0 %272
        %274 = vrot.lane.b32.xlu0 %v267, 112
        %v275 = vpop.permute.xlu0 %274
        %vm276 = vcmask 916480
        %v277 = vsel %vm276, %v273, %v275
        %v281 = vsel %vm276, %v275, %v273
        %282 = vrot.lane.b32.xlu0 %v266, 127
        %v283 = vpop.permute.xlu0 %282
        %284 = vrot.lane.b32.xlu0 %v267, 127
        %v285 = vpop.permute.xlu0 %284
        %vm286 = vcmask 1039360
        %v287 = vsel %vm286, %v283, %v285
        %v291 = vsel %vm286, %v285, %v283
        %292 = vrot.lane.b32.xlu0 %v267, 15
        %v293 = vpop.permute.xlu0 %292
        %295 = vrot.lane.b32.xlu0 %v266, 15
        %v296 = vpop.permute.xlu0 %295
        %vm297 = vcmask 121856
        %v298 = vsel %vm297, %v296, %v293
        %v301 = vsel %vm297, %v293, %v296
        %v302 = vlaneseq
        %v303 = vand.u32 %v302, 127
        %v304 = vadd.s32 %v303, 128
        %vm305 = vcmp.lt.s32.totalorder %v303, 0
        %v306 = vsub.s32 0, %v303
        %v307 = vsel %vm305, %v306, %v303
        %v308 = vshrl.u32 %v307, 4
        %v309 = vand.u32 %v307, 15
        %v310 = vsub.s32 0, %v309
        %v311 = vsel %vm305, %v310, %v309
        %vm312 = vcmp.lt.s32.totalorder %v304, 0
        %v313 = vsub.s32 0, %v304
        %v314 = vsel %vm312, %v313, %v304
        %v315 = vshrl.u32 %v314, 4
        %v316 = vand.u32 %v314, 15
        %v317 = vsub.s32 0, %v316
        %v318 = vsel %vm312, %v317, %v316
        %vm319 = vcmp.ne.s32.totalorder %v311, 0
        %vm320 = vcmp.ne.s32.totalorder %v318, 0
        %vm321 = vcmp.lt.s32.totalorder %v311, 0
        %vm322 = vcmp.lt.s32.totalorder %v318, 0
        %vm323 = vmand %vm321, %vm319
        %vm324 = vmand %vm322, %vm320
        %v325 = vadd.s32 %v311, 16
        %v326 = vadd.s32 %v318, 16
        %v327 = vsel %vm323, %v325, %v311
        %v328 = vsel %vm324, %v326, %v318
        %vm329 = vcmp.eq.s32.totalorder %v327, 15
        %vm330 = vcmp.eq.s32.totalorder %v328, 15
        %v331 = vsel %vm329, 1, 0
        %v332 = vsel %vm330, 1, 0
        %vm333 = vcmp.eq.s32.totalorder %v331, 1
        %vm334 = vcmp.eq.s32.totalorder %v332, 1
        %v335 = vsel %vm333, %v301, %v287
        %v336 = vsel %vm334, %v298, %v291
        %v337 = vmul.f32 %v266, %v266
        %v338 = vmul.f32 %v267, %v267
        %v339 = vsub.f32 %v277, %v266
        %v340 = vsub.f32 %v281, %v267
        %v341 = vmul.f32 %v339, %v339
        %v342 = vmul.f32 %v340, %v340
        %v343 = vsub.f32 %v335, %v266
        %v344 = vsub.f32 %v336, %v267
        %v345 = vmul.f32 %v343, %v343
        %v346 = vmul.f32 %v344, %v344
        %v347 = vadd.f32 %v341, %v345
        %v348 = vadd.f32 %v342, %v346
        %v349 = vmul.f32 %v347, 0.5
        %v350 = vmul.f32 %v348, 0.5
        %v351 = vmul.f32 %v337, 0.125
        %v352 = vmul.f32 %v338, 0.125
        %v353 = vadd.f32 %v349, %v351
        %v354 = vadd.f32 %v350, %v352
        %v355 = vmul.f32 %v337, 0.1
        %v356 = vmul.f32 %v338, 0.1
        %v357 = vmul.f32 %v355, %v337
        %v358 = vmul.f32 %v356, %v338
        %v359 = vadd.f32 %v353, %v357
        %v360 = vadd.f32 %v354, %v358
        %v361 = vmul.f32 %v238, %v238
        %v362 = vmul.f32 %v239, %v239
        %363 = vmatprep.subr.mxu0 0.0
        %364 = vmatpush1.xpose.msra.mxu0 0.0
        %365 = vmatprep.subr.mxu0 0.0
        %366 = vmatpush1.xpose.msra.mxu0 0.0
        %367 = vmatprep.subr.mxu0 0.0
        %368 = vmatpush1.xpose.msra.mxu0 0.0
        %369 = vmatprep.subr.mxu0 0.0
        %370 = vmatpush1.xpose.msra.mxu0 0.0
        %371 = vmatprep.subr.mxu0 0.0
        %372 = vmatpush1.xpose.msra.mxu0 0.0
        %373 = vmatprep.subr.mxu0 0.0
        %374 = vmatpush1.xpose.msra.mxu0 0.0
        %375 = vmatprep.subr.mxu0 0.0
        %376 = vmatpush1.xpose.msra.mxu0 0.0
        %377 = vmatprep.subr.mxu0 0.0
        %378 = vmatpush1.xpose.msra.mxu0 0.0
        %379 = vmatprep.subr.mxu0 0.0
        %380 = vmatpush1.xpose.msra.mxu0 0.0
        %381 = vmatprep.subr.mxu0 0.0
        %382 = vmatpush1.xpose.msra.mxu0 0.0
        %383 = vmatprep.subr.mxu0 0.0
        %384 = vmatpush1.xpose.msra.mxu0 0.0
        %385 = vmatprep.subr.mxu0 0.0
        %386 = vmatpush1.xpose.msra.mxu0 0.0
        %387 = vmatprep.subr.mxu0 0.0
        %388 = vmatpush1.xpose.msra.mxu0 0.0
        %389 = vmatprep.subr.mxu0 0.0
        %390 = vmatpush1.xpose.msra.mxu0 0.0
        %391 = vmatprep.subr.mxu0 0.0
        %392 = vmatpush1.xpose.msra.mxu0 0.0
        %v393 = vand.u32 %v362, 4294901760
        %394 = vmatprep.subr.mxu0 %v393
        %v395 = vand.u32 %v361, 4294901760
        %396 = vmatpush1.xpose.msra.mxu0 %v395
        %397 = vmatprep.subr.mxu0 0.0
        %398 = vmatpush2.xpose.msra.mxu0 0.0
        %399 = vmatprep.subr.mxu0 0.0
        %400 = vmatpush2.xpose.msra.mxu0 0.0
        %401 = vmatprep.subr.mxu0 0.0
        %402 = vmatpush2.xpose.msra.mxu0 0.0
        %403 = vmatprep.subr.mxu0 0.0
        %404 = vmatpush2.xpose.msra.mxu0 0.0
        %405 = vmatprep.subr.mxu0 0.0
        %406 = vmatpush2.xpose.msra.mxu0 0.0
        %407 = vmatprep.subr.mxu0 0.0
        %408 = vmatpush2.xpose.msra.mxu0 0.0
        %409 = vmatprep.subr.mxu0 0.0
        %410 = vmatpush2.xpose.msra.mxu0 0.0
        %411 = vmatprep.subr.mxu0 0.0
        %412 = vmatpush2.xpose.msra.mxu0 0.0
        %413 = vmatprep.subr.mxu0 0.0
        %414 = vmatpush2.xpose.msra.mxu0 0.0
        %415 = vmatprep.subr.mxu0 0.0
        %416 = vmatpush2.xpose.msra.mxu0 0.0
        %417 = vmatprep.subr.mxu0 0.0
        %418 = vmatpush2.xpose.msra.mxu0 0.0
        %419 = vmatprep.subr.mxu0 0.0
        %420 = vmatpush2.xpose.msra.mxu0 0.0
        %421 = vmatprep.subr.mxu0 0.0
        %422 = vmatpush2.xpose.msra.mxu0 0.0
        %423 = vmatprep.subr.mxu0 0.0
        %424 = vmatpush2.xpose.msra.mxu0 0.0
        %425 = vmatprep.subr.mxu0 0.0
        %426 = vmatpush2.xpose.msra.mxu0 0.0
        %427 = vmatprep.subr.mxu0 0.0
        %428 = vmatpush2.xpose.msra.mxu0 0.0
        %429 = vmatprep.mubr.f32.mxu0 0.0
        %430 = vmatmul.mubr.f32.gmra.mxu0 0.0
        %v431 = vpop.f32.mrf.mxu0
        %v432 = vadd.f32 0.0, %v431
        %v433 = vpop.f32.mrf.mxu0
        %434 = vdwg.mxu0
        %435 = vmatprep.subr.mxu0 0.0
        %436 = vmatpush1.xpose.msra.mxu0 0.0
        %437 = vmatprep.subr.mxu0 0.0
        %438 = vmatpush1.xpose.msra.mxu0 0.0
        %439 = vmatprep.subr.mxu0 0.0
        %440 = vmatpush1.xpose.msra.mxu0 0.0
        %441 = vmatprep.subr.mxu0 0.0
        %442 = vmatpush1.xpose.msra.mxu0 0.0
        %443 = vmatprep.subr.mxu0 0.0
        %444 = vmatpush1.xpose.msra.mxu0 0.0
        %445 = vmatprep.subr.mxu0 0.0
        %446 = vmatpush1.xpose.msra.mxu0 0.0
        %447 = vmatprep.subr.mxu0 0.0
        %448 = vmatpush1.xpose.msra.mxu0 0.0
        %449 = vmatprep.subr.mxu0 0.0
        %450 = vmatpush1.xpose.msra.mxu0 0.0
        %451 = vmatprep.subr.mxu0 0.0
        %452 = vmatpush1.xpose.msra.mxu0 0.0
        %453 = vmatprep.subr.mxu0 0.0
        %454 = vmatpush1.xpose.msra.mxu0 0.0
        %455 = vmatprep.subr.mxu0 0.0
        %456 = vmatpush1.xpose.msra.mxu0 0.0
        %457 = vmatprep.subr.mxu0 0.0
        %458 = vmatpush1.xpose.msra.mxu0 0.0
        %459 = vmatprep.subr.mxu0 0.0
        %460 = vmatpush1.xpose.msra.mxu0 0.0
        %461 = vmatprep.subr.mxu0 0.0
        %462 = vmatpush1.xpose.msra.mxu0 0.0
        %463 = vmatprep.subr.mxu0 0.0
        %464 = vmatpush1.xpose.msra.mxu0 0.0
        %v465 = vand.u32 %v362, 4294901760
        %v466 = vsub.f32 %v362, %v465
        %v467 = vand.u32 %v466, 4294901760
        %v468 = vsub.f32 %v466, %v467
        %v469 = vand.u32 %v468, 4294901760
        %470 = vmatprep.subr.mxu0 %v469
        %v471 = vand.u32 %v361, 4294901760
        %v472 = vsub.f32 %v361, %v471
        %v473 = vand.u32 %v472, 4294901760
        %v474 = vsub.f32 %v472, %v473
        %v475 = vand.u32 %v474, 4294901760
        %476 = vmatpush1.xpose.msra.mxu0 %v475
        %477 = vmatprep.subr.mxu0 0.0
        %478 = vmatpush2.xpose.msra.mxu0 0.0
        %479 = vmatprep.subr.mxu0 0.0
        %480 = vmatpush2.xpose.msra.mxu0 0.0
        %481 = vmatprep.subr.mxu0 0.0
        %482 = vmatpush2.xpose.msra.mxu0 0.0
        %483 = vmatprep.subr.mxu0 0.0
        %484 = vmatpush2.xpose.msra.mxu0 0.0
        %485 = vmatprep.subr.mxu0 0.0
        %486 = vmatpush2.xpose.msra.mxu0 0.0
        %487 = vmatprep.subr.mxu0 0.0
        %488 = vmatpush2.xpose.msra.mxu0 0.0
        %489 = vmatprep.subr.mxu0 0.0
        %490 = vmatpush2.xpose.msra.mxu0 0.0
        %491 = vmatprep.subr.mxu0 0.0
        %492 = vmatpush2.xpose.msra.mxu0 0.0
        %493 = vmatprep.subr.mxu0 0.0
        %494 = vmatpush2.xpose.msra.mxu0 0.0
        %495 = vmatprep.subr.mxu0 0.0
        %496 = vmatpush2.xpose.msra.mxu0 0.0
        %497 = vmatprep.subr.mxu0 0.0
        %498 = vmatpush2.xpose.msra.mxu0 0.0
        %499 = vmatprep.subr.mxu0 0.0
        %500 = vmatpush2.xpose.msra.mxu0 0.0
        %501 = vmatprep.subr.mxu0 0.0
        %502 = vmatpush2.xpose.msra.mxu0 0.0
        %503 = vmatprep.subr.mxu0 0.0
        %504 = vmatpush2.xpose.msra.mxu0 0.0
        %505 = vmatprep.subr.mxu0 0.0
        %506 = vmatpush2.xpose.msra.mxu0 0.0
        %507 = vmatprep.subr.mxu0 0.0
        %508 = vmatpush2.xpose.msra.mxu0 0.0
        %509 = vmatprep.mubr.f32.mxu0 -0.5
        %510 = vmatmul.mubr.f32.gmra.mxu0 -0.5
        %v511 = vpop.f32.mrf.mxu0
        %v512 = vadd.f32 %v432, %v511
        %v513 = vpop.f32.mrf.mxu0
        %514 = vdwg.mxu0
        %515 = vmatprep.subr.mxu0 0.0
        %516 = vmatpush1.xpose.msra.mxu0 0.0
        %517 = vmatprep.subr.mxu0 0.0
        %518 = vmatpush1.xpose.msra.mxu0 0.0
        %519 = vmatprep.subr.mxu0 0.0
        %520 = vmatpush1.xpose.msra.mxu0 0.0
        %521 = vmatprep.subr.mxu0 0.0
        %522 = vmatpush1.xpose.msra.mxu0 0.0
        %523 = vmatprep.subr.mxu0 0.0
        %524 = vmatpush1.xpose.msra.mxu0 0.0
        %525 = vmatprep.subr.mxu0 0.0
        %526 = vmatpush1.xpose.msra.mxu0 0.0
        %527 = vmatprep.subr.mxu0 0.0
        %528 = vmatpush1.xpose.msra.mxu0 0.0
        %529 = vmatprep.subr.mxu0 0.0
        %530 = vmatpush1.xpose.msra.mxu0 0.0
        %531 = vmatprep.subr.mxu0 0.0
        %532 = vmatpush1.xpose.msra.mxu0 0.0
        %533 = vmatprep.subr.mxu0 0.0
        %534 = vmatpush1.xpose.msra.mxu0 0.0
        %535 = vmatprep.subr.mxu0 0.0
        %536 = vmatpush1.xpose.msra.mxu0 0.0
        %537 = vmatprep.subr.mxu0 0.0
        %538 = vmatpush1.xpose.msra.mxu0 0.0
        %539 = vmatprep.subr.mxu0 0.0
        %540 = vmatpush1.xpose.msra.mxu0 0.0
        %541 = vmatprep.subr.mxu0 0.0
        %542 = vmatpush1.xpose.msra.mxu0 0.0
        %543 = vmatprep.subr.mxu0 0.0
        %544 = vmatpush1.xpose.msra.mxu0 0.0
        %v545 = vand.u32 %v362, 4294901760
        %v546 = vsub.f32 %v362, %v545
        %547 = vmatprep.subr.mxu0 %v546
        %v548 = vand.u32 %v361, 4294901760
        %v549 = vsub.f32 %v361, %v548
        %550 = vmatpush1.xpose.msra.mxu0 %v549
        %551 = vmatprep.subr.mxu0 0.0
        %552 = vmatpush2.xpose.msra.mxu0 0.0
        %553 = vmatprep.subr.mxu0 0.0
        %554 = vmatpush2.xpose.msra.mxu0 0.0
        %555 = vmatprep.subr.mxu0 0.0
        %556 = vmatpush2.xpose.msra.mxu0 0.0
        %557 = vmatprep.subr.mxu0 0.0
        %558 = vmatpush2.xpose.msra.mxu0 0.0
        %559 = vmatprep.subr.mxu0 0.0
        %560 = vmatpush2.xpose.msra.mxu0 0.0
        %561 = vmatprep.subr.mxu0 0.0
        %562 = vmatpush2.xpose.msra.mxu0 0.0
        %563 = vmatprep.subr.mxu0 0.0
        %564 = vmatpush2.xpose.msra.mxu0 0.0
        %565 = vmatprep.subr.mxu0 0.0
        %566 = vmatpush2.xpose.msra.mxu0 0.0
        %567 = vmatprep.subr.mxu0 0.0
        %568 = vmatpush2.xpose.msra.mxu0 0.0
        %569 = vmatprep.subr.mxu0 0.0
        %570 = vmatpush2.xpose.msra.mxu0 0.0
        %571 = vmatprep.subr.mxu0 0.0
        %572 = vmatpush2.xpose.msra.mxu0 0.0
        %573 = vmatprep.subr.mxu0 0.0
        %574 = vmatpush2.xpose.msra.mxu0 0.0
        %575 = vmatprep.subr.mxu0 0.0
        %576 = vmatpush2.xpose.msra.mxu0 0.0
        %577 = vmatprep.subr.mxu0 0.0
        %578 = vmatpush2.xpose.msra.mxu0 0.0
        %579 = vmatprep.subr.mxu0 0.0
        %580 = vmatpush2.xpose.msra.mxu0 0.0
        %581 = vmatprep.subr.mxu0 0.0
        %582 = vmatpush2.xpose.msra.mxu0 0.0
        %583 = vmatprep.mubr.f32.mxu0 0.0
        %584 = vmatmul.mubr.f32.gmra.mxu0 0.0
        %v585 = vpop.f32.mrf.mxu0
        %v586 = vadd.f32 %v512, %v585
        %v587 = vpop.f32.mrf.mxu0
        %588 = vdwg.mxu0
        %589 = vmatprep.subr.mxu0 0.0
        %590 = vmatpush1.xpose.msra.mxu0 0.0
        %591 = vmatprep.subr.mxu0 0.0
        %592 = vmatpush1.xpose.msra.mxu0 0.0
        %593 = vmatprep.subr.mxu0 0.0
        %594 = vmatpush1.xpose.msra.mxu0 0.0
        %595 = vmatprep.subr.mxu0 0.0
        %596 = vmatpush1.xpose.msra.mxu0 0.0
        %597 = vmatprep.subr.mxu0 0.0
        %598 = vmatpush1.xpose.msra.mxu0 0.0
        %599 = vmatprep.subr.mxu0 0.0
        %600 = vmatpush1.xpose.msra.mxu0 0.0
        %601 = vmatprep.subr.mxu0 0.0
        %602 = vmatpush1.xpose.msra.mxu0 0.0
        %603 = vmatprep.subr.mxu0 0.0
        %604 = vmatpush1.xpose.msra.mxu0 0.0
        %605 = vmatprep.subr.mxu0 0.0
        %606 = vmatpush1.xpose.msra.mxu0 0.0
        %607 = vmatprep.subr.mxu0 0.0
        %608 = vmatpush1.xpose.msra.mxu0 0.0
        %609 = vmatprep.subr.mxu0 0.0
        %610 = vmatpush1.xpose.msra.mxu0 0.0
        %611 = vmatprep.subr.mxu0 0.0
        %612 = vmatpush1.xpose.msra.mxu0 0.0
        %613 = vmatprep.subr.mxu0 0.0
        %614 = vmatpush1.xpose.msra.mxu0 0.0
        %615 = vmatprep.subr.mxu0 0.0
        %616 = vmatpush1.xpose.msra.mxu0 0.0
        %617 = vmatprep.subr.mxu0 0.0
        %618 = vmatpush1.xpose.msra.mxu0 0.0
        %v619 = vand.u32 %v362, 4294901760
        %620 = vmatprep.subr.mxu0 %v619
        %v621 = vand.u32 %v361, 4294901760
        %622 = vmatpush1.xpose.msra.mxu0 %v621
        %623 = vmatprep.subr.mxu0 0.0
        %624 = vmatpush2.xpose.msra.mxu0 0.0
        %625 = vmatprep.subr.mxu0 0.0
        %626 = vmatpush2.xpose.msra.mxu0 0.0
        %627 = vmatprep.subr.mxu0 0.0
        %628 = vmatpush2.xpose.msra.mxu0 0.0
        %629 = vmatprep.subr.mxu0 0.0
        %630 = vmatpush2.xpose.msra.mxu0 0.0
        %631 = vmatprep.subr.mxu0 0.0
        %632 = vmatpush2.xpose.msra.mxu0 0.0
        %633 = vmatprep.subr.mxu0 0.0
        %634 = vmatpush2.xpose.msra.mxu0 0.0
        %635 = vmatprep.subr.mxu0 0.0
        %636 = vmatpush2.xpose.msra.mxu0 0.0
        %637 = vmatprep.subr.mxu0 0.0
        %638 = vmatpush2.xpose.msra.mxu0 0.0
        %639 = vmatprep.subr.mxu0 0.0
        %640 = vmatpush2.xpose.msra.mxu0 0.0
        %641 = vmatprep.subr.mxu0 0.0
        %642 = vmatpush2.xpose.msra.mxu0 0.0
        %643 = vmatprep.subr.mxu0 0.0
        %644 = vmatpush2.xpose.msra.mxu0 0.0
        %645 = vmatprep.subr.mxu0 0.0
        %646 = vmatpush2.xpose.msra.mxu0 0.0
        %647 = vmatprep.subr.mxu0 0.0
        %648 = vmatpush2.xpose.msra.mxu0 0.0
        %649 = vmatprep.subr.mxu0 0.0
        %650 = vmatpush2.xpose.msra.mxu0 0.0
        %651 = vmatprep.subr.mxu0 0.0
        %652 = vmatpush2.xpose.msra.mxu0 0.0
        %653 = vmatprep.subr.mxu0 0.0
        %654 = vmatpush2.xpose.msra.mxu0 0.0
        %655 = vmatprep.mubr.f32.mxu0 0.0
        %656 = vmatmul.mubr.f32.gmra.mxu0 0.0
        %v657 = vpop.f32.mrf.mxu0
        %v658 = vadd.f32 %v586, %v657
        %v659 = vpop.f32.mrf.mxu0
        %660 = vdwg.mxu0
        %661 = vmatprep.subr.mxu0 0.0
        %662 = vmatpush1.xpose.msra.mxu0 0.0
        %663 = vmatprep.subr.mxu0 0.0
        %664 = vmatpush1.xpose.msra.mxu0 0.0
        %665 = vmatprep.subr.mxu0 0.0
        %666 = vmatpush1.xpose.msra.mxu0 0.0
        %667 = vmatprep.subr.mxu0 0.0
        %668 = vmatpush1.xpose.msra.mxu0 0.0
        %669 = vmatprep.subr.mxu0 0.0
        %670 = vmatpush1.xpose.msra.mxu0 0.0
        %671 = vmatprep.subr.mxu0 0.0
        %672 = vmatpush1.xpose.msra.mxu0 0.0
        %673 = vmatprep.subr.mxu0 0.0
        %674 = vmatpush1.xpose.msra.mxu0 0.0
        %675 = vmatprep.subr.mxu0 0.0
        %676 = vmatpush1.xpose.msra.mxu0 0.0
        %677 = vmatprep.subr.mxu0 0.0
        %678 = vmatpush1.xpose.msra.mxu0 0.0
        %679 = vmatprep.subr.mxu0 0.0
        %680 = vmatpush1.xpose.msra.mxu0 0.0
        %681 = vmatprep.subr.mxu0 0.0
        %682 = vmatpush1.xpose.msra.mxu0 0.0
        %683 = vmatprep.subr.mxu0 0.0
        %684 = vmatpush1.xpose.msra.mxu0 0.0
        %685 = vmatprep.subr.mxu0 0.0
        %686 = vmatpush1.xpose.msra.mxu0 0.0
        %687 = vmatprep.subr.mxu0 0.0
        %688 = vmatpush1.xpose.msra.mxu0 0.0
        %689 = vmatprep.subr.mxu0 0.0
        %690 = vmatpush1.xpose.msra.mxu0 0.0
        %v691 = vand.u32 %v362, 4294901760
        %v692 = vsub.f32 %v362, %v691
        %v693 = vand.u32 %v692, 4294901760
        %694 = vmatprep.subr.mxu0 %v693
        %v695 = vand.u32 %v361, 4294901760
        %v696 = vsub.f32 %v361, %v695
        %v697 = vand.u32 %v696, 4294901760
        %698 = vmatpush1.xpose.msra.mxu0 %v697
        %699 = vmatprep.subr.mxu0 0.0
        %700 = vmatpush2.xpose.msra.mxu0 0.0
        %701 = vmatprep.subr.mxu0 0.0
        %702 = vmatpush2.xpose.msra.mxu0 0.0
        %703 = vmatprep.subr.mxu0 0.0
        %704 = vmatpush2.xpose.msra.mxu0 0.0
        %705 = vmatprep.subr.mxu0 0.0
        %706 = vmatpush2.xpose.msra.mxu0 0.0
        %707 = vmatprep.subr.mxu0 0.0
        %708 = vmatpush2.xpose.msra.mxu0 0.0
        %709 = vmatprep.subr.mxu0 0.0
        %710 = vmatpush2.xpose.msra.mxu0 0.0
        %711 = vmatprep.subr.mxu0 0.0
        %712 = vmatpush2.xpose.msra.mxu0 0.0
        %713 = vmatprep.subr.mxu0 0.0
        %714 = vmatpush2.xpose.msra.mxu0 0.0
        %715 = vmatprep.subr.mxu0 0.0
        %716 = vmatpush2.xpose.msra.mxu0 0.0
        %717 = vmatprep.subr.mxu0 0.0
        %718 = vmatpush2.xpose.msra.mxu0 0.0
        %719 = vmatprep.subr.mxu0 0.0
        %720 = vmatpush2.xpose.msra.mxu0 0.0
        %721 = vmatprep.subr.mxu0 0.0
        %722 = vmatpush2.xpose.msra.mxu0 0.0
        %723 = vmatprep.subr.mxu0 0.0
        %724 = vmatpush2.xpose.msra.mxu0 0.0
        %725 = vmatprep.subr.mxu0 0.0
        %726 = vmatpush2.xpose.msra.mxu0 0.0
        %727 = vmatprep.subr.mxu0 0.0
        %728 = vmatpush2.xpose.msra.mxu0 0.0
        %729 = vmatprep.subr.mxu0 0.0
        %730 = vmatpush2.xpose.msra.mxu0 0.0
        %731 = vmatprep.mubr.f32.mxu0 -0.5
        %732 = vmatmul.mubr.f32.gmra.mxu0 -0.5
        %v733 = vpop.f32.mrf.mxu0
        %v734 = vadd.f32 %v658, %v733
        %v735 = vpop.f32.mrf.mxu0
        %736 = vdwg.mxu0
        %737 = vmatprep.subr.mxu0 0.0
        %738 = vmatpush1.xpose.msra.mxu0 0.0
        %739 = vmatprep.subr.mxu0 0.0
        %740 = vmatpush1.xpose.msra.mxu0 0.0
        %741 = vmatprep.subr.mxu0 0.0
        %742 = vmatpush1.xpose.msra.mxu0 0.0
        %743 = vmatprep.subr.mxu0 0.0
        %744 = vmatpush1.xpose.msra.mxu0 0.0
        %745 = vmatprep.subr.mxu0 0.0
        %746 = vmatpush1.xpose.msra.mxu0 0.0
        %747 = vmatprep.subr.mxu0 0.0
        %748 = vmatpush1.xpose.msra.mxu0 0.0
        %749 = vmatprep.subr.mxu0 0.0
        %750 = vmatpush1.xpose.msra.mxu0 0.0
        %751 = vmatprep.subr.mxu0 0.0
        %752 = vmatpush1.xpose.msra.mxu0 0.0
        %753 = vmatprep.subr.mxu0 0.0
        %754 = vmatpush1.xpose.msra.mxu0 0.0
        %755 = vmatprep.subr.mxu0 0.0
        %756 = vmatpush1.xpose.msra.mxu0 0.0
        %757 = vmatprep.subr.mxu0 0.0
        %758 = vmatpush1.xpose.msra.mxu0 0.0
        %759 = vmatprep.subr.mxu0 0.0
        %760 = vmatpush1.xpose.msra.mxu0 0.0
        %761 = vmatprep.subr.mxu0 0.0
        %762 = vmatpush1.xpose.msra.mxu0 0.0
        %763 = vmatprep.subr.mxu0 0.0
        %764 = vmatpush1.xpose.msra.mxu0 0.0
        %765 = vmatprep.subr.mxu0 0.0
        %766 = vmatpush1.xpose.msra.mxu0 0.0
        %v767 = vand.u32 %v362, 4294901760
        %768 = vmatprep.subr.mxu0 %v767
        %v769 = vand.u32 %v361, 4294901760
        %770 = vmatpush1.xpose.msra.mxu0 %v769
        %771 = vmatprep.subr.mxu0 0.0
        %772 = vmatpush2.xpose.msra.mxu0 0.0
        %773 = vmatprep.subr.mxu0 0.0
        %774 = vmatpush2.xpose.msra.mxu0 0.0
        %775 = vmatprep.subr.mxu0 0.0
        %776 = vmatpush2.xpose.msra.mxu0 0.0
        %777 = vmatprep.subr.mxu0 0.0
        %778 = vmatpush2.xpose.msra.mxu0 0.0
        %779 = vmatprep.subr.mxu0 0.0
        %780 = vmatpush2.xpose.msra.mxu0 0.0
        %781 = vmatprep.subr.mxu0 0.0
        %782 = vmatpush2.xpose.msra.mxu0 0.0
        %783 = vmatprep.subr.mxu0 0.0
        %784 = vmatpush2.xpose.msra.mxu0 0.0
        %785 = vmatprep.subr.mxu0 0.0
        %786 = vmatpush2.xpose.msra.mxu0 0.0
        %787 = vmatprep.subr.mxu0 0.0
        %788 = vmatpush2.xpose.msra.mxu0 0.0
        %789 = vmatprep.subr.mxu0 0.0
        %790 = vmatpush2.xpose.msra.mxu0 0.0
        %791 = vmatprep.subr.mxu0 0.0
        %792 = vmatpush2.xpose.msra.mxu0 0.0
        %793 = vmatprep.subr.mxu0 0.0
        %794 = vmatpush2.xpose.msra.mxu0 0.0
        %795 = vmatprep.subr.mxu0 0.0
        %796 = vmatpush2.xpose.msra.mxu0 0.0
        %797 = vmatprep.subr.mxu0 0.0
        %798 = vmatpush2.xpose.msra.mxu0 0.0
        %799 = vmatprep.subr.mxu0 0.0
        %800 = vmatpush2.xpose.msra.mxu0 0.0
        %801 = vmatprep.subr.mxu0 0.0
        %802 = vmatpush2.xpose.msra.mxu0 0.0
        %803 = vmatprep.mubr.f32.mxu0 -0.5
        %804 = vmatmul.mubr.f32.gmra.mxu0 -0.5
        %v805 = vpop.f32.mrf.mxu0
        %v806 = vadd.f32 %v734, %v805
        %v807 = vpop.f32.mrf.mxu0
        %808 = vdwg.mxu0
        %809 = vmatprep.subr.mxu0 0.0
        %810 = vmatpush1.xpose.msra.mxu0 0.0
        %811 = vmatprep.subr.mxu0 0.0
        %812 = vmatpush1.xpose.msra.mxu0 0.0
        %813 = vmatprep.subr.mxu0 0.0
        %814 = vmatpush1.xpose.msra.mxu0 0.0
        %815 = vmatprep.subr.mxu0 0.0
        %816 = vmatpush1.xpose.msra.mxu0 0.0
        %817 = vmatprep.subr.mxu0 0.0
        %818 = vmatpush1.xpose.msra.mxu0 0.0
        %819 = vmatprep.subr.mxu0 0.0
        %820 = vmatpush1.xpose.msra.mxu0 0.0
        %821 = vmatprep.subr.mxu0 0.0
        %822 = vmatpush1.xpose.msra.mxu0 0.0
        %823 = vmatprep.subr.mxu0 0.0
        %824 = vmatpush1.xpose.msra.mxu0 0.0
        %825 = vmatprep.subr.mxu0 0.0
        %826 = vmatpush1.xpose.msra.mxu0 0.0
        %827 = vmatprep.subr.mxu0 0.0
        %828 = vmatpush1.xpose.msra.mxu0 0.0
        %829 = vmatprep.subr.mxu0 0.0
        %830 = vmatpush1.xpose.msra.mxu0 0.0
        %831 = vmatprep.subr.mxu0 0.0
        %832 = vmatpush1.xpose.msra.mxu0 0.0
        %833 = vmatprep.subr.mxu0 0.0
        %834 = vmatpush1.xpose.msra.mxu0 0.0
        %835 = vmatprep.subr.mxu0 0.0
        %836 = vmatpush1.xpose.msra.mxu0 0.0
        %837 = vmatprep.subr.mxu0 0.0
        %838 = vmatpush1.xpose.msra.mxu0 0.0
        %v839 = vand.u32 %v360, 4294901760
        %840 = vmatprep.subr.mxu0 %v839
        %v841 = vand.u32 %v359, 4294901760
        %842 = vmatpush1.xpose.msra.mxu0 %v841
        %843 = vmatprep.subr.mxu0 0.0
        %844 = vmatpush2.xpose.msra.mxu0 0.0
        %845 = vmatprep.subr.mxu0 0.0
        %846 = vmatpush2.xpose.msra.mxu0 0.0
        %847 = vmatprep.subr.mxu0 0.0
        %848 = vmatpush2.xpose.msra.mxu0 0.0
        %849 = vmatprep.subr.mxu0 0.0
        %850 = vmatpush2.xpose.msra.mxu0 0.0
        %851 = vmatprep.subr.mxu0 0.0
        %852 = vmatpush2.xpose.msra.mxu0 0.0
        %853 = vmatprep.subr.mxu0 0.0
        %854 = vmatpush2.xpose.msra.mxu0 0.0
        %855 = vmatprep.subr.mxu0 0.0
        %856 = vmatpush2.xpose.msra.mxu0 0.0
        %857 = vmatprep.subr.mxu0 0.0
        %858 = vmatpush2.xpose.msra.mxu0 0.0
        %859 = vmatprep.subr.mxu0 0.0
        %860 = vmatpush2.xpose.msra.mxu0 0.0
        %861 = vmatprep.subr.mxu0 0.0
        %862 = vmatpush2.xpose.msra.mxu0 0.0
        %863 = vmatprep.subr.mxu0 0.0
        %864 = vmatpush2.xpose.msra.mxu0 0.0
        %865 = vmatprep.subr.mxu0 0.0
        %866 = vmatpush2.xpose.msra.mxu0 0.0
        %867 = vmatprep.subr.mxu0 0.0
        %868 = vmatpush2.xpose.msra.mxu0 0.0
        %869 = vmatprep.subr.mxu0 0.0
        %870 = vmatpush2.xpose.msra.mxu0 0.0
        %871 = vmatprep.subr.mxu0 0.0
        %872 = vmatpush2.xpose.msra.mxu0 0.0
        %873 = vmatprep.subr.mxu0 0.0
        %874 = vmatpush2.xpose.msra.mxu0 0.0
        %875 = vmatprep.mubr.f32.mxu0 0.0
        %876 = vmatmul.mubr.f32.gmra.mxu0 0.0
        %v877 = vpop.f32.mrf.mxu0
        %v878 = vadd.f32 0.0, %v877
        %v879 = vpop.f32.mrf.mxu0
        %880 = vdwg.mxu0
        %881 = vmatprep.subr.mxu0 0.0
        %882 = vmatpush1.xpose.msra.mxu0 0.0
        %883 = vmatprep.subr.mxu0 0.0
        %884 = vmatpush1.xpose.msra.mxu0 0.0
        %885 = vmatprep.subr.mxu0 0.0
        %886 = vmatpush1.xpose.msra.mxu0 0.0
        %887 = vmatprep.subr.mxu0 0.0
        %888 = vmatpush1.xpose.msra.mxu0 0.0
        %889 = vmatprep.subr.mxu0 0.0
        %890 = vmatpush1.xpose.msra.mxu0 0.0
        %891 = vmatprep.subr.mxu0 0.0
        %892 = vmatpush1.xpose.msra.mxu0 0.0
        %893 = vmatprep.subr.mxu0 0.0
        %894 = vmatpush1.xpose.msra.mxu0 0.0
        %895 = vmatprep.subr.mxu0 0.0
        %896 = vmatpush1.xpose.msra.mxu0 0.0
        %897 = vmatprep.subr.mxu0 0.0
        %898 = vmatpush1.xpose.msra.mxu0 0.0
        %899 = vmatprep.subr.mxu0 0.0
        %900 = vmatpush1.xpose.msra.mxu0 0.0
        %901 = vmatprep.subr.mxu0 0.0
        %902 = vmatpush1.xpose.msra.mxu0 0.0
        %903 = vmatprep.subr.mxu0 0.0
        %904 = vmatpush1.xpose.msra.mxu0 0.0
        %905 = vmatprep.subr.mxu0 0.0
        %906 = vmatpush1.xpose.msra.mxu0 0.0
        %907 = vmatprep.subr.mxu0 0.0
        %908 = vmatpush1.xpose.msra.mxu0 0.0
        %909 = vmatprep.subr.mxu0 0.0
        %910 = vmatpush1.xpose.msra.mxu0 0.0
        %v911 = vand.u32 %v360, 4294901760
        %v912 = vsub.f32 %v360, %v911
        %v913 = vand.u32 %v912, 4294901760
        %v914 = vsub.f32 %v912, %v913
        %v915 = vand.u32 %v914, 4294901760
        %916 = vmatprep.subr.mxu0 %v915
        %v917 = vand.u32 %v359, 4294901760
        %v918 = vsub.f32 %v359, %v917
        %v919 = vand.u32 %v918, 4294901760
        %v920 = vsub.f32 %v918, %v919
        %v921 = vand.u32 %v920, 4294901760
        %922 = vmatpush1.xpose.msra.mxu0 %v921
        %923 = vmatprep.subr.mxu0 0.0
        %924 = vmatpush2.xpose.msra.mxu0 0.0
        %925 = vmatprep.subr.mxu0 0.0
        %926 = vmatpush2.xpose.msra.mxu0 0.0
        %927 = vmatprep.subr.mxu0 0.0
        %928 = vmatpush2.xpose.msra.mxu0 0.0
        %929 = vmatprep.subr.mxu0 0.0
        %930 = vmatpush2.xpose.msra.mxu0 0.0
        %931 = vmatprep.subr.mxu0 0.0
        %932 = vmatpush2.xpose.msra.mxu0 0.0
        %933 = vmatprep.subr.mxu0 0.0
        %934 = vmatpush2.xpose.msra.mxu0 0.0
        %935 = vmatprep.subr.mxu0 0.0
        %936 = vmatpush2.xpose.msra.mxu0 0.0
        %937 = vmatprep.subr.mxu0 0.0
        %938 = vmatpush2.xpose.msra.mxu0 0.0
        %939 = vmatprep.subr.mxu0 0.0
        %940 = vmatpush2.xpose.msra.mxu0 0.0
        %941 = vmatprep.subr.mxu0 0.0
        %942 = vmatpush2.xpose.msra.mxu0 0.0
        %943 = vmatprep.subr.mxu0 0.0
        %944 = vmatpush2.xpose.msra.mxu0 0.0
        %945 = vmatprep.subr.mxu0 0.0
        %946 = vmatpush2.xpose.msra.mxu0 0.0
        %947 = vmatprep.subr.mxu0 0.0
        %948 = vmatpush2.xpose.msra.mxu0 0.0
        %949 = vmatprep.subr.mxu0 0.0
        %950 = vmatpush2.xpose.msra.mxu0 0.0
        %951 = vmatprep.subr.mxu0 0.0
        %952 = vmatpush2.xpose.msra.mxu0 0.0
        %953 = vmatprep.subr.mxu0 0.0
        %954 = vmatpush2.xpose.msra.mxu0 0.0
        %955 = vmatprep.mubr.f32.mxu0 1.0
        %956 = vmatmul.mubr.f32.gmra.mxu0 1.0
        %v957 = vpop.f32.mrf.mxu0
        %v958 = vadd.f32 %v878, %v957
        %v959 = vpop.f32.mrf.mxu0
        %960 = vdwg.mxu0
        %961 = vmatprep.subr.mxu0 0.0
        %962 = vmatpush1.xpose.msra.mxu0 0.0
        %963 = vmatprep.subr.mxu0 0.0
        %964 = vmatpush1.xpose.msra.mxu0 0.0
        %965 = vmatprep.subr.mxu0 0.0
        %966 = vmatpush1.xpose.msra.mxu0 0.0
        %967 = vmatprep.subr.mxu0 0.0
        %968 = vmatpush1.xpose.msra.mxu0 0.0
        %969 = vmatprep.subr.mxu0 0.0
        %970 = vmatpush1.xpose.msra.mxu0 0.0
        %971 = vmatprep.subr.mxu0 0.0
        %972 = vmatpush1.xpose.msra.mxu0 0.0
        %973 = vmatprep.subr.mxu0 0.0
        %974 = vmatpush1.xpose.msra.mxu0 0.0
        %975 = vmatprep.subr.mxu0 0.0
        %976 = vmatpush1.xpose.msra.mxu0 0.0
        %977 = vmatprep.subr.mxu0 0.0
        %978 = vmatpush1.xpose.msra.mxu0 0.0
        %979 = vmatprep.subr.mxu0 0.0
        %980 = vmatpush1.xpose.msra.mxu0 0.0
        %981 = vmatprep.subr.mxu0 0.0
        %982 = vmatpush1.xpose.msra.mxu0 0.0
        %983 = vmatprep.subr.mxu0 0.0
        %984 = vmatpush1.xpose.msra.mxu0 0.0
        %985 = vmatprep.subr.mxu0 0.0
        %986 = vmatpush1.xpose.msra.mxu0 0.0
        %987 = vmatprep.subr.mxu0 0.0
        %988 = vmatpush1.xpose.msra.mxu0 0.0
        %989 = vmatprep.subr.mxu0 0.0
        %990 = vmatpush1.xpose.msra.mxu0 0.0
        %v991 = vand.u32 %v360, 4294901760
        %v992 = vsub.f32 %v360, %v991
        %993 = vmatprep.subr.mxu0 %v992
        %v994 = vand.u32 %v359, 4294901760
        %v995 = vsub.f32 %v359, %v994
        %996 = vmatpush1.xpose.msra.mxu0 %v995
        %997 = vmatprep.subr.mxu0 0.0
        %998 = vmatpush2.xpose.msra.mxu0 0.0
        %999 = vmatprep.subr.mxu0 0.0
        %1000 = vmatpush2.xpose.msra.mxu0 0.0
        %1001 = vmatprep.subr.mxu0 0.0
        %1002 = vmatpush2.xpose.msra.mxu0 0.0
        %1003 = vmatprep.subr.mxu0 0.0
        %1004 = vmatpush2.xpose.msra.mxu0 0.0
        %1005 = vmatprep.subr.mxu0 0.0
        %1006 = vmatpush2.xpose.msra.mxu0 0.0
        %1007 = vmatprep.subr.mxu0 0.0
        %1008 = vmatpush2.xpose.msra.mxu0 0.0
        %1009 = vmatprep.subr.mxu0 0.0
        %1010 = vmatpush2.xpose.msra.mxu0 0.0
        %1011 = vmatprep.subr.mxu0 0.0
        %1012 = vmatpush2.xpose.msra.mxu0 0.0
        %1013 = vmatprep.subr.mxu0 0.0
        %1014 = vmatpush2.xpose.msra.mxu0 0.0
        %1015 = vmatprep.subr.mxu0 0.0
        %1016 = vmatpush2.xpose.msra.mxu0 0.0
        %1017 = vmatprep.subr.mxu0 0.0
        %1018 = vmatpush2.xpose.msra.mxu0 0.0
        %1019 = vmatprep.subr.mxu0 0.0
        %1020 = vmatpush2.xpose.msra.mxu0 0.0
        %1021 = vmatprep.subr.mxu0 0.0
        %1022 = vmatpush2.xpose.msra.mxu0 0.0
        %1023 = vmatprep.subr.mxu0 0.0
        %1024 = vmatpush2.xpose.msra.mxu0 0.0
        %1025 = vmatprep.subr.mxu0 0.0
        %1026 = vmatpush2.xpose.msra.mxu0 0.0
        %1027 = vmatprep.subr.mxu0 0.0
        %1028 = vmatpush2.xpose.msra.mxu0 0.0
        %1029 = vmatprep.mubr.f32.mxu0 0.0
        %1030 = vmatmul.mubr.f32.gmra.mxu0 0.0
        %v1031 = vpop.f32.mrf.mxu0
        %v1032 = vadd.f32 %v958, %v1031
        %v1033 = vpop.f32.mrf.mxu0
        %1034 = vdwg.mxu0
        %1035 = vmatprep.subr.mxu0 0.0
        %1036 = vmatpush1.xpose.msra.mxu0 0.0
        %1037 = vmatprep.subr.mxu0 0.0
        %1038 = vmatpush1.xpose.msra.mxu0 0.0
        %1039 = vmatprep.subr.mxu0 0.0
        %1040 = vmatpush1.xpose.msra.mxu0 0.0
        %1041 = vmatprep.subr.mxu0 0.0
        %1042 = vmatpush1.xpose.msra.mxu0 0.0
        %1043 = vmatprep.subr.mxu0 0.0
        %1044 = vmatpush1.xpose.msra.mxu0 0.0
        %1045 = vmatprep.subr.mxu0 0.0
        %1046 = vmatpush1.xpose.msra.mxu0 0.0
        %1047 = vmatprep.subr.mxu0 0.0
        %1048 = vmatpush1.xpose.msra.mxu0 0.0
        %1049 = vmatprep.subr.mxu0 0.0
        %1050 = vmatpush1.xpose.msra.mxu0 0.0
        %1051 = vmatprep.subr.mxu0 0.0
        %1052 = vmatpush1.xpose.msra.mxu0 0.0
        %1053 = vmatprep.subr.mxu0 0.0
        %1054 = vmatpush1.xpose.msra.mxu0 0.0
        %1055 = vmatprep.subr.mxu0 0.0
        %1056 = vmatpush1.xpose.msra.mxu0 0.0
        %1057 = vmatprep.subr.mxu0 0.0
        %1058 = vmatpush1.xpose.msra.mxu0 0.0
        %1059 = vmatprep.subr.mxu0 0.0
        %1060 = vmatpush1.xpose.msra.mxu0 0.0
        %1061 = vmatprep.subr.mxu0 0.0
        %1062 = vmatpush1.xpose.msra.mxu0 0.0
        %1063 = vmatprep.subr.mxu0 0.0
        %1064 = vmatpush1.xpose.msra.mxu0 0.0
        %v1065 = vand.u32 %v360, 4294901760
        %1066 = vmatprep.subr.mxu0 %v1065
        %v1067 = vand.u32 %v359, 4294901760
        %1068 = vmatpush1.xpose.msra.mxu0 %v1067
        %1069 = vmatprep.subr.mxu0 0.0
        %1070 = vmatpush2.xpose.msra.mxu0 0.0
        %1071 = vmatprep.subr.mxu0 0.0
        %1072 = vmatpush2.xpose.msra.mxu0 0.0
        %1073 = vmatprep.subr.mxu0 0.0
        %1074 = vmatpush2.xpose.msra.mxu0 0.0
        %1075 = vmatprep.subr.mxu0 0.0
        %1076 = vmatpush2.xpose.msra.mxu0 0.0
        %1077 = vmatprep.subr.mxu0 0.0
        %1078 = vmatpush2.xpose.msra.mxu0 0.0
        %1079 = vmatprep.subr.mxu0 0.0
        %1080 = vmatpush2.xpose.msra.mxu0 0.0
        %1081 = vmatprep.subr.mxu0 0.0
        %1082 = vmatpush2.xpose.msra.mxu0 0.0
        %1083 = vmatprep.subr.mxu0 0.0
        %1084 = vmatpush2.xpose.msra.mxu0 0.0
        %1085 = vmatprep.subr.mxu0 0.0
        %1086 = vmatpush2.xpose.msra.mxu0 0.0
        %1087 = vmatprep.subr.mxu0 0.0
        %1088 = vmatpush2.xpose.msra.mxu0 0.0
        %1089 = vmatprep.subr.mxu0 0.0
        %1090 = vmatpush2.xpose.msra.mxu0 0.0
        %1091 = vmatprep.subr.mxu0 0.0
        %1092 = vmatpush2.xpose.msra.mxu0 0.0
        %1093 = vmatprep.subr.mxu0 0.0
        %1094 = vmatpush2.xpose.msra.mxu0 0.0
        %1095 = vmatprep.subr.mxu0 0.0
        %1096 = vmatpush2.xpose.msra.mxu0 0.0
        %1097 = vmatprep.subr.mxu0 0.0
        %1098 = vmatpush2.xpose.msra.mxu0 0.0
        %1099 = vmatprep.subr.mxu0 0.0
        %1100 = vmatpush2.xpose.msra.mxu0 0.0
        %1101 = vmatprep.mubr.f32.mxu0 0.0
        %1102 = vmatmul.mubr.f32.gmra.mxu0 0.0
        %v1103 = vpop.f32.mrf.mxu0
        %v1104 = vadd.f32 %v1032, %v1103
        %v1105 = vpop.f32.mrf.mxu0
        %1106 = vdwg.mxu0
        %1107 = vmatprep.subr.mxu0 0.0
        %1108 = vmatpush1.xpose.msra.mxu0 0.0
        %1109 = vmatprep.subr.mxu0 0.0
        %1110 = vmatpush1.xpose.msra.mxu0 0.0
        %1111 = vmatprep.subr.mxu0 0.0
        %1112 = vmatpush1.xpose.msra.mxu0 0.0
        %1113 = vmatprep.subr.mxu0 0.0
        %1114 = vmatpush1.xpose.msra.mxu0 0.0
        %1115 = vmatprep.subr.mxu0 0.0
        %1116 = vmatpush1.xpose.msra.mxu0 0.0
        %1117 = vmatprep.subr.mxu0 0.0
        %1118 = vmatpush1.xpose.msra.mxu0 0.0
        %1119 = vmatprep.subr.mxu0 0.0
        %1120 = vmatpush1.xpose.msra.mxu0 0.0
        %1121 = vmatprep.subr.mxu0 0.0
        %1122 = vmatpush1.xpose.msra.mxu0 0.0
        %1123 = vmatprep.subr.mxu0 0.0
        %1124 = vmatpush1.xpose.msra.mxu0 0.0
        %1125 = vmatprep.subr.mxu0 0.0
        %1126 = vmatpush1.xpose.msra.mxu0 0.0
        %1127 = vmatprep.subr.mxu0 0.0
        %1128 = vmatpush1.xpose.msra.mxu0 0.0
        %1129 = vmatprep.subr.mxu0 0.0
        %1130 = vmatpush1.xpose.msra.mxu0 0.0
        %1131 = vmatprep.subr.mxu0 0.0
        %1132 = vmatpush1.xpose.msra.mxu0 0.0
        %1133 = vmatprep.subr.mxu0 0.0
        %1134 = vmatpush1.xpose.msra.mxu0 0.0
        %1135 = vmatprep.subr.mxu0 0.0
        %1136 = vmatpush1.xpose.msra.mxu0 0.0
        %v1137 = vand.u32 %v360, 4294901760
        %v1138 = vsub.f32 %v360, %v1137
        %v1139 = vand.u32 %v1138, 4294901760
        %1140 = vmatprep.subr.mxu0 %v1139
        %v1141 = vand.u32 %v359, 4294901760
        %v1142 = vsub.f32 %v359, %v1141
        %v1143 = vand.u32 %v1142, 4294901760
        %1144 = vmatpush1.xpose.msra.mxu0 %v1143
        %1145 = vmatprep.subr.mxu0 0.0
        %1146 = vmatpush2.xpose.msra.mxu0 0.0
        %1147 = vmatprep.subr.mxu0 0.0
        %1148 = vmatpush2.xpose.msra.mxu0 0.0
        %1149 = vmatprep.subr.mxu0 0.0
        %1150 = vmatpush2.xpose.msra.mxu0 0.0
        %1151 = vmatprep.subr.mxu0 0.0
        %1152 = vmatpush2.xpose.msra.mxu0 0.0
        %1153 = vmatprep.subr.mxu0 0.0
        %1154 = vmatpush2.xpose.msra.mxu0 0.0
        %1155 = vmatprep.subr.mxu0 0.0
        %1156 = vmatpush2.xpose.msra.mxu0 0.0
        %1157 = vmatprep.subr.mxu0 0.0
        %1158 = vmatpush2.xpose.msra.mxu0 0.0
        %1159 = vmatprep.subr.mxu0 0.0
        %1160 = vmatpush2.xpose.msra.mxu0 0.0
        %1161 = vmatprep.subr.mxu0 0.0
        %1162 = vmatpush2.xpose.msra.mxu0 0.0
        %1163 = vmatprep.subr.mxu0 0.0
        %1164 = vmatpush2.xpose.msra.mxu0 0.0
        %1165 = vmatprep.subr.mxu0 0.0
        %1166 = vmatpush2.xpose.msra.mxu0 0.0
        %1167 = vmatprep.subr.mxu0 0.0
        %1168 = vmatpush2.xpose.msra.mxu0 0.0
        %1169 = vmatprep.subr.mxu0 0.0
        %1170 = vmatpush2.xpose.msra.mxu0 0.0
        %1171 = vmatprep.subr.mxu0 0.0
        %1172 = vmatpush2.xpose.msra.mxu0 0.0
        %1173 = vmatprep.subr.mxu0 0.0
        %1174 = vmatpush2.xpose.msra.mxu0 0.0
        %1175 = vmatprep.subr.mxu0 0.0
        %1176 = vmatpush2.xpose.msra.mxu0 0.0
        %1177 = vmatprep.mubr.f32.mxu0 1.0
        %1178 = vmatmul.mubr.f32.gmra.mxu0 1.0
        %v1179 = vpop.f32.mrf.mxu0
        %v1180 = vadd.f32 %v1104, %v1179
        %v1181 = vpop.f32.mrf.mxu0
        %1182 = vdwg.mxu0
        %1183 = vmatprep.subr.mxu0 0.0
        %1184 = vmatpush1.xpose.msra.mxu0 0.0
        %1185 = vmatprep.subr.mxu0 0.0
        %1186 = vmatpush1.xpose.msra.mxu0 0.0
        %1187 = vmatprep.subr.mxu0 0.0
        %1188 = vmatpush1.xpose.msra.mxu0 0.0
        %1189 = vmatprep.subr.mxu0 0.0
        %1190 = vmatpush1.xpose.msra.mxu0 0.0
        %1191 = vmatprep.subr.mxu0 0.0
        %1192 = vmatpush1.xpose.msra.mxu0 0.0
        %1193 = vmatprep.subr.mxu0 0.0
        %1194 = vmatpush1.xpose.msra.mxu0 0.0
        %1195 = vmatprep.subr.mxu0 0.0
        %1196 = vmatpush1.xpose.msra.mxu0 0.0
        %1197 = vmatprep.subr.mxu0 0.0
        %1198 = vmatpush1.xpose.msra.mxu0 0.0
        %1199 = vmatprep.subr.mxu0 0.0
        %1200 = vmatpush1.xpose.msra.mxu0 0.0
        %1201 = vmatprep.subr.mxu0 0.0
        %1202 = vmatpush1.xpose.msra.mxu0 0.0
        %1203 = vmatprep.subr.mxu0 0.0
        %1204 = vmatpush1.xpose.msra.mxu0 0.0
        %1205 = vmatprep.subr.mxu0 0.0
        %1206 = vmatpush1.xpose.msra.mxu0 0.0
        %1207 = vmatprep.subr.mxu0 0.0
        %1208 = vmatpush1.xpose.msra.mxu0 0.0
        %1209 = vmatprep.subr.mxu0 0.0
        %1210 = vmatpush1.xpose.msra.mxu0 0.0
        %1211 = vmatprep.subr.mxu0 0.0
        %1212 = vmatpush1.xpose.msra.mxu0 0.0
        %v1213 = vand.u32 %v360, 4294901760
        %1214 = vmatprep.subr.mxu0 %v1213
        %v1215 = vand.u32 %v359, 4294901760
        %1216 = vmatpush1.xpose.msra.mxu0 %v1215
        %1217 = vmatprep.subr.mxu0 0.0
        %1218 = vmatpush2.xpose.msra.mxu0 0.0
        %1219 = vmatprep.subr.mxu0 0.0
        %1220 = vmatpush2.xpose.msra.mxu0 0.0
        %1221 = vmatprep.subr.mxu0 0.0
        %1222 = vmatpush2.xpose.msra.mxu0 0.0
        %1223 = vmatprep.subr.mxu0 0.0
        %1224 = vmatpush2.xpose.msra.mxu0 0.0
        %1225 = vmatprep.subr.mxu0 0.0
        %1226 = vmatpush2.xpose.msra.mxu0 0.0
        %1227 = vmatprep.subr.mxu0 0.0
        %1228 = vmatpush2.xpose.msra.mxu0 0.0
        %1229 = vmatprep.subr.mxu0 0.0
        %1230 = vmatpush2.xpose.msra.mxu0 0.0
        %1231 = vmatprep.subr.mxu0 0.0
        %1232 = vmatpush2.xpose.msra.mxu0 0.0
        %1233 = vmatprep.subr.mxu0 0.0
        %1234 = vmatpush2.xpose.msra.mxu0 0.0
        %1235 = vmatprep.subr.mxu0 0.0
        %1236 = vmatpush2.xpose.msra.mxu0 0.0
        %1237 = vmatprep.subr.mxu0 0.0
        %1238 = vmatpush2.xpose.msra.mxu0 0.0
        %1239 = vmatprep.subr.mxu0 0.0
        %1240 = vmatpush2.xpose.msra.mxu0 0.0
        %1241 = vmatprep.subr.mxu0 0.0
        %1242 = vmatpush2.xpose.msra.mxu0 0.0
        %1243 = vmatprep.subr.mxu0 0.0
        %1244 = vmatpush2.xpose.msra.mxu0 0.0
        %1245 = vmatprep.subr.mxu0 0.0
        %1246 = vmatpush2.xpose.msra.mxu0 0.0
        %1247 = vmatprep.subr.mxu0 0.0
        %1248 = vmatpush2.xpose.msra.mxu0 0.0
        %1249 = vmatprep.mubr.f32.mxu0 1.0
        %1250 = vmatmul.mubr.f32.gmra.mxu0 1.0
        %v1251 = vpop.f32.mrf.mxu0
        %v1252 = vadd.f32 %v1180, %v1251
        %v1253 = vpop.f32.mrf.mxu0
        %1254 = vdwg.mxu0
        %v1256 = vrot.slane %v1252, 7
        %vm1258 = vcmask 1040384
        %v1259 = vsel %vm1258, %v806, %v1256
        %vm1260 = vcmask 58368
        %1261 = vst.msk [vmem:[%s237] sm:$0x3] %vm1260, %v1259
        %s1262 = sand.u32 %s102, 1
        %s1263 = scalar_lea.sflag [#allocation4], %s1262
        %s1264 = sand.u32 %s102, 1
        %s1265 = smul.addr %s1264, 16
        %s1266 = scalar_lea.vmem [#allocation7], %s1265
        %s1267 = sand.u32 %s128, 1
        %s1268 = scalar_lea.sflag [#allocation9], %s1267
        %s1269 = sand.u32 %s128, 1
        %s1270 = smul.addr %s1269, 2
        %s1271 = scalar_lea.vmem [#allocation8], %s1270
        // Predicated region
        $region41: #{tpu_custom_call.1} parent=31 // pred_check
          %p1272 = pneg %p112
        $region42: #{tpu_custom_call.1} parent=31 // pred_check_branch
          %1274 = sbr.rel (%p1272) target = $region44
        $region43: #{tpu_custom_call.1} parent=31 // pred_region
          %s1276 = ssub.s32 256, 256
          %1277 = vsyncadd %s1263, %s1276
          %s1278 = smul.addr %s26, 2
          %s1279 = smul.addr %s1278, 128
          %s1280 = scalar_lea.hbm %s3, %s1279
          %s1282 = sshll.u32 %s1266, 4
          %s1283 = int_to_ptr.vmem [resolvable:$true] %s1282
          %1285 = dma.vmem_to_hbm [thread:$0]  %s1283, 256, %s1280, %s1263
        $region44: #{tpu_custom_call.1} parent=31 // pred_fallthru
          _
        // Predicated region
        $region45: #{tpu_custom_call.1} parent=31 // pred_check
          %p1286 = pneg %p138
        $region46: #{tpu_custom_call.1} parent=31 // pred_check_branch
          %1288 = sbr.rel (%p1286) target = $region48
        $region47: #{tpu_custom_call.1} parent=31 // pred_region
          %s1290 = ssub.s32 32, 32
          %1291 = vsyncadd %s1268, %s1290
          %s1292 = smul.addr %s26, 32
          %s1293 = scalar_lea.hbm %s4, %s1292
          %s1295 = sshll.u32 %s1271, 4
          %s1296 = int_to_ptr.vmem [resolvable:$true] %s1295
          %1298 = dma.vmem_to_hbm [thread:$0]  %s1296, 32, %s1293, %s1268
        $region48: #{tpu_custom_call.1} parent=31 // pred_fallthru
          _
      $region32: #{tpu_custom_call.1} parent=5 // pred_fallthru
        _
      %p1299 = scmp.le.s32.totalorder 2, %s21
      // Predicated region
      $region49: #{tpu_custom_call.1} parent=5 // pred_check
        %p1300 = pneg %p1299
      $region50: #{tpu_custom_call.1} parent=5 // pred_check_branch
        %1302 = sbr.rel (%p1300) target = $region52
      $region51: #{tpu_custom_call.1} parent=5 // pred_region
        %s1303 = ssub.s32 %s21, 2
        // Predicated region
        $region53: #{tpu_custom_call.1} parent=51 // pred_check
          %p1304 = pneg %p118
        $region54: #{tpu_custom_call.1} parent=51 // pred_check_branch
          %1306 = sbr.rel (%p1304) target = $region56
        $region55: #{tpu_custom_call.1} parent=51 // pred_region
          %s1307 = sand.u32 %s103, 1
          %s1308 = scalar_lea.sflag [#allocation4], %s1307
          %s1309 = sand.u32 %s103, 1
          %s1310 = smul.addr %s1309, 16
          %s1311 = scalar_lea.vmem [#allocation7], %s1310
          %1312 = dma.done %s1308, 256
        $region56: #{tpu_custom_call.1} parent=51 // pred_fallthru
          _
        // Predicated region
        $region57: #{tpu_custom_call.1} parent=51 // pred_check
          %p1313 = pneg %p144
        $region58: #{tpu_custom_call.1} parent=51 // pred_check_branch
          %1315 = sbr.rel (%p1313) target = $region60
        $region59: #{tpu_custom_call.1} parent=51 // pred_region
          %s1316 = sand.u32 %s129, 1
          %s1317 = scalar_lea.sflag [#allocation9], %s1316
          %s1318 = sand.u32 %s129, 1
          %s1319 = smul.addr %s1318, 2
          %s1320 = scalar_lea.vmem [#allocation8], %s1319
          %1321 = dma.done %s1317, 32
        $region60: #{tpu_custom_call.1} parent=51 // pred_fallthru
          _
      $region52: #{tpu_custom_call.1} parent=5 // pred_fallthru
        _
    $region6: #{tpu_custom_call.1} parent=1 // loop_footer
      %s25 = sadd.s32 1, %s21
    $region7: #{tpu_custom_call.1} parent=1 // loop_footer_branch
      %20 = sbr.rel target = $region3
    $region8: #{tpu_custom_call.1} parent=1 // loop_exit
      _
    %1322 = vsyncpa [#allocation3], 1
    %s1323 = scalar_lea.sflag [#allocation3], 1
    %1324 = vsyncpa %s1323, 1
    %1325 = vsyncpa [#allocation6], 1
    %1326 = vsyncpa [#allocation4], 1
    %s1327 = scalar_lea.sflag [#allocation4], 1
    %1328 = vsyncpa %s1327, 1
    %1329 = vsyncpa [#allocation9], 1
    %s1330 = scalar_lea.sflag [#allocation9], 1
    %1331 = vsyncpa %s1330, 1

</llo_original>
